<compile_context>
chip_gen: v6e
topology: v6e:2x2x1
jax: 0.10.0
libtpu: 0.0.40
codegen_flags: <defaults>
</compile_context>

<pallas_src>
import functools

import jax
import jax.numpy as jnp
from jax.experimental import pallas as pl
from jax.experimental.pallas import tpu as pltpu


def _sigmoid(x):
    # Plain formulation so the Pallas kernel and the pure-JAX reference use
    # bit-identical math (exp on the EUP, exact divide).
    return 1.0 / (1.0 + jnp.exp(-x))


def lstm_kernel(x_ref, w_ih_ref, w_hh_ref, b_ref, w_fc_ref, b_fc_ref, o_ref,
                *, seq_len, hidden):
    # x_ref:    (B_t * T, D_in)   rows are batch-major: row = b * T + t
    # w_ih_ref: (D_in, 4H)        transposed PyTorch weight_ih
    # w_hh_ref: (H, 4H)           transposed PyTorch weight_hh
    # b_ref:    (1, 4H)           b_ih + b_hh
    # w_fc_ref: (H, D_out)        transposed fc weight
    # b_fc_ref: (1, D_out)
    # o_ref:    (B_t, D_out)
    rows, _ = x_ref.shape
    bt = rows // seq_len
    H = hidden

    x = x_ref[...].astype(jnp.float32)
    w_ih = w_ih_ref[...].astype(jnp.float32)
    w_hh = w_hh_ref[...].astype(jnp.float32)
    b = b_ref[...].astype(jnp.float32)

    # One big MXU matmul: input projection for every (batch, time) row.
    xg = jnp.dot(x, w_ih, preferred_element_type=jnp.float32) + b   # (bt*T, 4H)
    xg = xg.reshape(bt, seq_len, 4 * H)

    h = jnp.zeros((bt, H), jnp.float32)
    c = jnp.zeros((bt, H), jnp.float32)

    # Sequential recurrence over time (trip count is small and static, so a
    # fully unrolled loop gives the LLO scheduler full visibility).
    for t in range(seq_len):
        gates = xg[:, t, :] + jnp.dot(h, w_hh,
                                      preferred_element_type=jnp.float32)
        i_g = _sigmoid(gates[:, 0 * H:1 * H])
        f_g = _sigmoid(gates[:, 1 * H:2 * H])
        g_g = jnp.tanh(gates[:, 2 * H:3 * H])
        o_g = _sigmoid(gates[:, 3 * H:4 * H])
        c = f_g * c + i_g * g_g
        h = o_g * jnp.tanh(c)

    # Final projection fc(h_T).
    out = jnp.dot(h, w_fc_ref[...].astype(jnp.float32),
                  preferred_element_type=jnp.float32)
    out = out + b_fc_ref[...].astype(jnp.float32)
    o_ref[...] = out.astype(o_ref.dtype)


def lstm_forward(x, w_ih, w_hh, b_ih, b_hh, w_fc, b_fc, *, batch_tile=None):
    """x: (B, T, D_in); PyTorch-layout weights:
       w_ih (4H, D_in), w_hh (4H, H), b_ih/b_hh (4H,), w_fc (D_out, H), b_fc (D_out,).
       Returns fc(h_T): (B, D_out)."""
    B, T, D_in = x.shape
    H4 = w_ih.shape[0]
    H = H4 // 4
    D_out = w_fc.shape[0]
    assert w_hh.shape == (H4, H) and w_fc.shape == (D_out, H)

    bt = batch_tile if batch_tile is not None else min(B, 8)
    assert B % bt == 0, "batch must be divisible by the batch tile"

    # Layout plumbing outside the kernel (cheap XLA ops): batch-major 2-D view
    # of x, transposed weights so the kernel contracts with lane-dense (·, 4H)
    # operands, and the two LSTM biases folded into one.
    x2d = x.reshape(B * T, D_in)
    w_ih_t = jnp.transpose(w_ih)              # (D_in, 4H)
    w_hh_t = jnp.transpose(w_hh)              # (H, 4H)
    b = (b_ih + b_hh).reshape(1, 4 * H)
    w_fc_t = jnp.transpose(w_fc)              # (H, D_out)
    b_fc2 = b_fc.reshape(1, D_out)

    kernel = functools.partial(lstm_kernel, seq_len=T, hidden=H)

    return pl.pallas_call(
        kernel,
        out_shape=jax.ShapeDtypeStruct((B, D_out), x.dtype),
        grid_spec=pltpu.PrefetchScalarGridSpec(
            num_scalar_prefetch=0,
            grid=(B // bt,),
            in_specs=[
                pl.BlockSpec((bt * T, D_in), lambda i: (i, 0)),
                pl.BlockSpec((D_in, 4 * H), lambda i: (0, 0)),
                pl.BlockSpec((H, 4 * H), lambda i: (0, 0)),
                pl.BlockSpec((1, 4 * H), lambda i: (0, 0)),
                pl.BlockSpec((H, D_out), lambda i: (0, 0)),
                pl.BlockSpec((1, D_out), lambda i: (0, 0)),
            ],
            out_specs=pl.BlockSpec((bt, D_out), lambda i: (i, 0)),
        ),
        compiler_params=pltpu.CompilerParams(
            dimension_semantics=("parallel",),
        ),
    )(x2d, w_ih_t, w_hh_t, b, w_fc_t, b_fc2)


def lstm_ref(x, w_ih, w_hh, b_ih, b_hh, w_fc, b_fc):
    """Pure-JAX reference implementing PyTorch nn.LSTM (single layer,
    batch_first, zero initial state, gate order i,f,g,o) + final fc."""
    B, T, _ = x.shape
    H = w_hh.shape[1]
    b = b_ih + b_hh
    h = jnp.zeros((B, H), jnp.float32)
    c = jnp.zeros((B, H), jnp.float32)
    for t in range(T):
        gates = x[:, t, :] @ w_ih.T + b + h @ w_hh.T
        i = _sigmoid(gates[:, 0 * H:1 * H])
        f = _sigmoid(gates[:, 1 * H:2 * H])
        g = jnp.tanh(gates[:, 2 * H:3 * H])
        o = _sigmoid(gates[:, 3 * H:4 * H])
        c = f * c + i * g
        h = o * jnp.tanh(c)
    return h @ w_fc.T + b_fc


if __name__ == "__main__":
    B, T, D_in, H, D_out = 2, 8, 16, 32, 4

    key = jax.random.PRNGKey(0)
    ks = jax.random.split(key, 7)

    x = jax.random.normal(ks[0], (B, T, D_in), dtype=jnp.float32)

    bound = 1.0 / (H ** 0.5)   # PyTorch LSTM/Linear uniform init bound
    def unif(k, shape):
        return jax.random.uniform(k, shape, dtype=jnp.float32,
                                  minval=-bound, maxval=bound)

    w_ih = unif(ks[1], (4 * H, D_in))
    w_hh = unif(ks[2], (4 * H, H))
    b_ih = unif(ks[3], (4 * H,))
    b_hh = unif(ks[4], (4 * H,))
    w_fc = unif(ks[5], (D_out, H))
    b_fc = unif(ks[6], (D_out,))

    out = lstm_forward(x, w_ih, w_hh, b_ih, b_hh, w_fc, b_fc)
    out = jax.block_until_ready(out)

    ref = lstm_ref(x, w_ih, w_hh, b_ih, b_hh, w_fc, b_fc)
    assert out.shape == (B, D_out)
    assert jnp.allclose(out, ref, atol=1e-5, rtol=1e-5), \
        float(jnp.max(jnp.abs(out - ref)))

    print("KERNEL_OK")
</pallas_src>

<mosaic_0001>
module attributes {stable_mosaic.version = 11 : i64} {
  func.func @lstm_kernel(%arg0: i32, %arg1: memref<16x16xf32, #tpu.memory_space<vmem>>, %arg2: memref<16x128xf32, #tpu.memory_space<vmem>>, %arg3: memref<32x128xf32, #tpu.memory_space<vmem>>, %arg4: memref<1x128xf32, #tpu.memory_space<vmem>>, %arg5: memref<32x4xf32, #tpu.memory_space<vmem>>, %arg6: memref<1x4xf32, #tpu.memory_space<vmem>>, %arg7: memref<2x4xf32, #tpu.memory_space<vmem>>) attributes {dimension_semantics = [#tpu.dimension_semantics<parallel>], iteration_bounds = array<i64: 1>, scalar_prefetch = 0 : i64, scratch_operands = 0 : i64, tpu.core_type = #tpu.core_type<tc>, window_params = [{transform_indices = @transform_0, window_bounds = array<i64: 16, 16>}, {pipeline_mode = #tpu.pipeline_mode<synchronous>, transform_indices = @transform_1, window_bounds = array<i64: 16, 128>}, {pipeline_mode = #tpu.pipeline_mode<synchronous>, transform_indices = @transform_2, window_bounds = array<i64: 32, 128>}, {pipeline_mode = #tpu.pipeline_mode<synchronous>, transform_indices = @transform_3, window_bounds = array<i64: 1, 128>}, {pipeline_mode = #tpu.pipeline_mode<synchronous>, transform_indices = @transform_4, window_bounds = array<i64: 32, 4>}, {pipeline_mode = #tpu.pipeline_mode<synchronous>, transform_indices = @transform_5, window_bounds = array<i64: 1, 4>}, {transform_indices = @transform_6, window_bounds = array<i64: 2, 4>}]} {
    %c0 = arith.constant 0 : index
    %c0_0 = arith.constant 0 : index
    %0 = vector.load %arg1[%c0, %c0_0] : memref<16x16xf32, #tpu.memory_space<vmem>>, vector<16x16xf32>
    %c0_1 = arith.constant 0 : index
    %c0_2 = arith.constant 0 : index
    %1 = vector.load %arg2[%c0_1, %c0_2] : memref<16x128xf32, #tpu.memory_space<vmem>>, vector<16x128xf32>
    %c0_3 = arith.constant 0 : index
    %c0_4 = arith.constant 0 : index
    %2 = vector.load %arg3[%c0_3, %c0_4] : memref<32x128xf32, #tpu.memory_space<vmem>>, vector<32x128xf32>
    %c0_5 = arith.constant 0 : index
    %c0_6 = arith.constant 0 : index
    %3 = vector.load %arg4[%c0_5, %c0_6] : memref<1x128xf32, #tpu.memory_space<vmem>>, vector<1x128xf32>
    %cst = arith.constant dense<0.000000e+00> : vector<16x128xf32>
    %4 = tpu.matmul %0, %1, %cst {dimension_numbers = #tpu.dot_dimension_numbers<[1], [0], [0], [1], [0, 0, 1, 1], [], []>} : vector<16x16xf32>, vector<16x128xf32>, vector<16x128xf32> -> vector<16x128xf32>
    %5 = vector.broadcast %3 : vector<1x128xf32> to vector<16x128xf32>
    %6 = arith.addf %4, %5 : vector<16x128xf32>
    %7 = vector.shape_cast %6 : vector<16x128xf32> to vector<2x8x128xf32>
    %cst_7 = arith.constant 0.000000e+00 : f32
    %8 = vector.broadcast %cst_7 : f32 to vector<2x32xf32>
    %cst_8 = arith.constant 0.000000e+00 : f32
    %9 = vector.broadcast %cst_8 : f32 to vector<2x32xf32>
    %10 = vector.extract_strided_slice %7 {offsets = [0, 0, 0], sizes = [2, 1, 128], strides = [1, 1, 1]} : vector<2x8x128xf32> to vector<2x1x128xf32>
    %11 = vector.shape_cast %10 : vector<2x1x128xf32> to vector<2x128xf32>
    %cst_9 = arith.constant dense<0.000000e+00> : vector<2x128xf32>
    %12 = tpu.matmul %8, %2, %cst_9 {dimension_numbers = #tpu.dot_dimension_numbers<[1], [0], [0], [1], [0, 0, 1, 1], [], []>} : vector<2x32xf32>, vector<32x128xf32>, vector<2x128xf32> -> vector<2x128xf32>
    %13 = arith.addf %11, %12 : vector<2x128xf32>
    %14 = vector.extract_strided_slice %13 {offsets = [0, 0], sizes = [2, 32], strides = [1, 1]} : vector<2x128xf32> to vector<2x32xf32>
    %cst_10 = arith.constant 0.000000e+00 : f32
    %15 = vector.broadcast %cst_10 : f32 to vector<2x32xf32>
    %16 = arith.subf %15, %14 : vector<2x32xf32>
    %17 = math.exp %16 : vector<2x32xf32>
    %cst_11 = arith.constant 1.000000e+00 : f32
    %18 = vector.broadcast %cst_11 : f32 to vector<2x32xf32>
    %19 = arith.addf %18, %17 : vector<2x32xf32>
    %cst_12 = arith.constant 1.000000e+00 : f32
    %20 = vector.broadcast %cst_12 : f32 to vector<2x32xf32>
    %21 = arith.divf %20, %19 : vector<2x32xf32>
    %22 = vector.extract_strided_slice %13 {offsets = [0, 32], sizes = [2, 32], strides = [1, 1]} : vector<2x128xf32> to vector<2x32xf32>
    %cst_13 = arith.constant 0.000000e+00 : f32
    %23 = vector.broadcast %cst_13 : f32 to vector<2x32xf32>
    %24 = arith.subf %23, %22 : vector<2x32xf32>
    %25 = math.exp %24 : vector<2x32xf32>
    %cst_14 = arith.constant 1.000000e+00 : f32
    %26 = vector.broadcast %cst_14 : f32 to vector<2x32xf32>
    %27 = arith.addf %26, %25 : vector<2x32xf32>
    %cst_15 = arith.constant 1.000000e+00 : f32
    %28 = vector.broadcast %cst_15 : f32 to vector<2x32xf32>
    %29 = arith.divf %28, %27 : vector<2x32xf32>
    %30 = vector.extract_strided_slice %13 {offsets = [0, 64], sizes = [2, 32], strides = [1, 1]} : vector<2x128xf32> to vector<2x32xf32>
    %31 = math.tanh %30 : vector<2x32xf32>
    %32 = vector.extract_strided_slice %13 {offsets = [0, 96], sizes = [2, 32], strides = [1, 1]} : vector<2x128xf32> to vector<2x32xf32>
    %cst_16 = arith.constant 0.000000e+00 : f32
    %33 = vector.broadcast %cst_16 : f32 to vector<2x32xf32>
    %34 = arith.subf %33, %32 : vector<2x32xf32>
    %35 = math.exp %34 : vector<2x32xf32>
    %cst_17 = arith.constant 1.000000e+00 : f32
    %36 = vector.broadcast %cst_17 : f32 to vector<2x32xf32>
    %37 = arith.addf %36, %35 : vector<2x32xf32>
    %cst_18 = arith.constant 1.000000e+00 : f32
    %38 = vector.broadcast %cst_18 : f32 to vector<2x32xf32>
    %39 = arith.divf %38, %37 : vector<2x32xf32>
    %40 = arith.mulf %29, %9 : vector<2x32xf32>
    %41 = arith.mulf %21, %31 : vector<2x32xf32>
    %42 = arith.addf %40, %41 : vector<2x32xf32>
    %43 = math.tanh %42 : vector<2x32xf32>
    %44 = arith.mulf %39, %43 : vector<2x32xf32>
    %45 = vector.extract_strided_slice %7 {offsets = [0, 1, 0], sizes = [2, 1, 128], strides = [1, 1, 1]} : vector<2x8x128xf32> to vector<2x1x128xf32>
    %46 = vector.shape_cast %45 : vector<2x1x128xf32> to vector<2x128xf32>
    %cst_19 = arith.constant dense<0.000000e+00> : vector<2x128xf32>
    %47 = tpu.matmul %44, %2, %cst_19 {dimension_numbers = #tpu.dot_dimension_numbers<[1], [0], [0], [1], [0, 0, 1, 1], [], []>} : vector<2x32xf32>, vector<32x128xf32>, vector<2x128xf32> -> vector<2x128xf32>
    %48 = arith.addf %46, %47 : vector<2x128xf32>
    %49 = vector.extract_strided_slice %48 {offsets = [0, 0], sizes = [2, 32], strides = [1, 1]} : vector<2x128xf32> to vector<2x32xf32>
    %cst_20 = arith.constant 0.000000e+00 : f32
    %50 = vector.broadcast %cst_20 : f32 to vector<2x32xf32>
    %51 = arith.subf %50, %49 : vector<2x32xf32>
    %52 = math.exp %51 : vector<2x32xf32>
    %cst_21 = arith.constant 1.000000e+00 : f32
    %53 = vector.broadcast %cst_21 : f32 to vector<2x32xf32>
    %54 = arith.addf %53, %52 : vector<2x32xf32>
    %cst_22 = arith.constant 1.000000e+00 : f32
    %55 = vector.broadcast %cst_22 : f32 to vector<2x32xf32>
    %56 = arith.divf %55, %54 : vector<2x32xf32>
    %57 = vector.extract_strided_slice %48 {offsets = [0, 32], sizes = [2, 32], strides = [1, 1]} : vector<2x128xf32> to vector<2x32xf32>
    %cst_23 = arith.constant 0.000000e+00 : f32
    %58 = vector.broadcast %cst_23 : f32 to vector<2x32xf32>
    %59 = arith.subf %58, %57 : vector<2x32xf32>
    %60 = math.exp %59 : vector<2x32xf32>
    %cst_24 = arith.constant 1.000000e+00 : f32
    %61 = vector.broadcast %cst_24 : f32 to vector<2x32xf32>
    %62 = arith.addf %61, %60 : vector<2x32xf32>
    %cst_25 = arith.constant 1.000000e+00 : f32
    %63 = vector.broadcast %cst_25 : f32 to vector<2x32xf32>
    %64 = arith.divf %63, %62 : vector<2x32xf32>
    %65 = vector.extract_strided_slice %48 {offsets = [0, 64], sizes = [2, 32], strides = [1, 1]} : vector<2x128xf32> to vector<2x32xf32>
    %66 = math.tanh %65 : vector<2x32xf32>
    %67 = vector.extract_strided_slice %48 {offsets = [0, 96], sizes = [2, 32], strides = [1, 1]} : vector<2x128xf32> to vector<2x32xf32>
    %cst_26 = arith.constant 0.000000e+00 : f32
    %68 = vector.broadcast %cst_26 : f32 to vector<2x32xf32>
    %69 = arith.subf %68, %67 : vector<2x32xf32>
    %70 = math.exp %69 : vector<2x32xf32>
    %cst_27 = arith.constant 1.000000e+00 : f32
    %71 = vector.broadcast %cst_27 : f32 to vector<2x32xf32>
    %72 = arith.addf %71, %70 : vector<2x32xf32>
    %cst_28 = arith.constant 1.000000e+00 : f32
    %73 = vector.broadcast %cst_28 : f32 to vector<2x32xf32>
    %74 = arith.divf %73, %72 : vector<2x32xf32>
    %75 = arith.mulf %64, %42 : vector<2x32xf32>
    %76 = arith.mulf %56, %66 : vector<2x32xf32>
    %77 = arith.addf %75, %76 : vector<2x32xf32>
    %78 = math.tanh %77 : vector<2x32xf32>
    %79 = arith.mulf %74, %78 : vector<2x32xf32>
    %80 = vector.extract_strided_slice %7 {offsets = [0, 2, 0], sizes = [2, 1, 128], strides = [1, 1, 1]} : vector<2x8x128xf32> to vector<2x1x128xf32>
    %81 = vector.shape_cast %80 : vector<2x1x128xf32> to vector<2x128xf32>
    %cst_29 = arith.constant dense<0.000000e+00> : vector<2x128xf32>
    %82 = tpu.matmul %79, %2, %cst_29 {dimension_numbers = #tpu.dot_dimension_numbers<[1], [0], [0], [1], [0, 0, 1, 1], [], []>} : vector<2x32xf32>, vector<32x128xf32>, vector<2x128xf32> -> vector<2x128xf32>
    %83 = arith.addf %81, %82 : vector<2x128xf32>
    %84 = vector.extract_strided_slice %83 {offsets = [0, 0], sizes = [2, 32], strides = [1, 1]} : vector<2x128xf32> to vector<2x32xf32>
    %cst_30 = arith.constant 0.000000e+00 : f32
    %85 = vector.broadcast %cst_30 : f32 to vector<2x32xf32>
    %86 = arith.subf %85, %84 : vector<2x32xf32>
    %87 = math.exp %86 : vector<2x32xf32>
    %cst_31 = arith.constant 1.000000e+00 : f32
    %88 = vector.broadcast %cst_31 : f32 to vector<2x32xf32>
    %89 = arith.addf %88, %87 : vector<2x32xf32>
    %cst_32 = arith.constant 1.000000e+00 : f32
    %90 = vector.broadcast %cst_32 : f32 to vector<2x32xf32>
    %91 = arith.divf %90, %89 : vector<2x32xf32>
    %92 = vector.extract_strided_slice %83 {offsets = [0, 32], sizes = [2, 32], strides = [1, 1]} : vector<2x128xf32> to vector<2x32xf32>
    %cst_33 = arith.constant 0.000000e+00 : f32
    %93 = vector.broadcast %cst_33 : f32 to vector<2x32xf32>
    %94 = arith.subf %93, %92 : vector<2x32xf32>
    %95 = math.exp %94 : vector<2x32xf32>
    %cst_34 = arith.constant 1.000000e+00 : f32
    %96 = vector.broadcast %cst_34 : f32 to vector<2x32xf32>
    %97 = arith.addf %96, %95 : vector<2x32xf32>
    %cst_35 = arith.constant 1.000000e+00 : f32
    %98 = vector.broadcast %cst_35 : f32 to vector<2x32xf32>
    %99 = arith.divf %98, %97 : vector<2x32xf32>
    %100 = vector.extract_strided_slice %83 {offsets = [0, 64], sizes = [2, 32], strides = [1, 1]} : vector<2x128xf32> to vector<2x32xf32>
    %101 = math.tanh %100 : vector<2x32xf32>
    %102 = vector.extract_strided_slice %83 {offsets = [0, 96], sizes = [2, 32], strides = [1, 1]} : vector<2x128xf32> to vector<2x32xf32>
    %cst_36 = arith.constant 0.000000e+00 : f32
    %103 = vector.broadcast %cst_36 : f32 to vector<2x32xf32>
    %104 = arith.subf %103, %102 : vector<2x32xf32>
    %105 = math.exp %104 : vector<2x32xf32>
    %cst_37 = arith.constant 1.000000e+00 : f32
    %106 = vector.broadcast %cst_37 : f32 to vector<2x32xf32>
    %107 = arith.addf %106, %105 : vector<2x32xf32>
    %cst_38 = arith.constant 1.000000e+00 : f32
    %108 = vector.broadcast %cst_38 : f32 to vector<2x32xf32>
    %109 = arith.divf %108, %107 : vector<2x32xf32>
    %110 = arith.mulf %99, %77 : vector<2x32xf32>
    %111 = arith.mulf %91, %101 : vector<2x32xf32>
    %112 = arith.addf %110, %111 : vector<2x32xf32>
    %113 = math.tanh %112 : vector<2x32xf32>
    %114 = arith.mulf %109, %113 : vector<2x32xf32>
    %115 = vector.extract_strided_slice %7 {offsets = [0, 3, 0], sizes = [2, 1, 128], strides = [1, 1, 1]} : vector<2x8x128xf32> to vector<2x1x128xf32>
    %116 = vector.shape_cast %115 : vector<2x1x128xf32> to vector<2x128xf32>
    %cst_39 = arith.constant dense<0.000000e+00> : vector<2x128xf32>
    %117 = tpu.matmul %114, %2, %cst_39 {dimension_numbers = #tpu.dot_dimension_numbers<[1], [0], [0], [1], [0, 0, 1, 1], [], []>} : vector<2x32xf32>, vector<32x128xf32>, vector<2x128xf32> -> vector<2x128xf32>
    %118 = arith.addf %116, %117 : vector<2x128xf32>
    %119 = vector.extract_strided_slice %118 {offsets = [0, 0], sizes = [2, 32], strides = [1, 1]} : vector<2x128xf32> to vector<2x32xf32>
    %cst_40 = arith.constant 0.000000e+00 : f32
    %120 = vector.broadcast %cst_40 : f32 to vector<2x32xf32>
    %121 = arith.subf %120, %119 : vector<2x32xf32>
    %122 = math.exp %121 : vector<2x32xf32>
    %cst_41 = arith.constant 1.000000e+00 : f32
    %123 = vector.broadcast %cst_41 : f32 to vector<2x32xf32>
    %124 = arith.addf %123, %122 : vector<2x32xf32>
    %cst_42 = arith.constant 1.000000e+00 : f32
    %125 = vector.broadcast %cst_42 : f32 to vector<2x32xf32>
    %126 = arith.divf %125, %124 : vector<2x32xf32>
    %127 = vector.extract_strided_slice %118 {offsets = [0, 32], sizes = [2, 32], strides = [1, 1]} : vector<2x128xf32> to vector<2x32xf32>
    %cst_43 = arith.constant 0.000000e+00 : f32
    %128 = vector.broadcast %cst_43 : f32 to vector<2x32xf32>
    %129 = arith.subf %128, %127 : vector<2x32xf32>
    %130 = math.exp %129 : vector<2x32xf32>
    %cst_44 = arith.constant 1.000000e+00 : f32
    %131 = vector.broadcast %cst_44 : f32 to vector<2x32xf32>
    %132 = arith.addf %131, %130 : vector<2x32xf32>
    %cst_45 = arith.constant 1.000000e+00 : f32
    %133 = vector.broadcast %cst_45 : f32 to vector<2x32xf32>
    %134 = arith.divf %133, %132 : vector<2x32xf32>
    %135 = vector.extract_strided_slice %118 {offsets = [0, 64], sizes = [2, 32], strides = [1, 1]} : vector<2x128xf32> to vector<2x32xf32>
    %136 = math.tanh %135 : vector<2x32xf32>
    %137 = vector.extract_strided_slice %118 {offsets = [0, 96], sizes = [2, 32], strides = [1, 1]} : vector<2x128xf32> to vector<2x32xf32>
    %cst_46 = arith.constant 0.000000e+00 : f32
    %138 = vector.broadcast %cst_46 : f32 to vector<2x32xf32>
    %139 = arith.subf %138, %137 : vector<2x32xf32>
    %140 = math.exp %139 : vector<2x32xf32>
    %cst_47 = arith.constant 1.000000e+00 : f32
    %141 = vector.broadcast %cst_47 : f32 to vector<2x32xf32>
    %142 = arith.addf %141, %140 : vector<2x32xf32>
    %cst_48 = arith.constant 1.000000e+00 : f32
    %143 = vector.broadcast %cst_48 : f32 to vector<2x32xf32>
    %144 = arith.divf %143, %142 : vector<2x32xf32>
    %145 = arith.mulf %134, %112 : vector<2x32xf32>
    %146 = arith.mulf %126, %136 : vector<2x32xf32>
    %147 = arith.addf %145, %146 : vector<2x32xf32>
    %148 = math.tanh %147 : vector<2x32xf32>
    %149 = arith.mulf %144, %148 : vector<2x32xf32>
    %150 = vector.extract_strided_slice %7 {offsets = [0, 4, 0], sizes = [2, 1, 128], strides = [1, 1, 1]} : vector<2x8x128xf32> to vector<2x1x128xf32>
    %151 = vector.shape_cast %150 : vector<2x1x128xf32> to vector<2x128xf32>
    %cst_49 = arith.constant dense<0.000000e+00> : vector<2x128xf32>
    %152 = tpu.matmul %149, %2, %cst_49 {dimension_numbers = #tpu.dot_dimension_numbers<[1], [0], [0], [1], [0, 0, 1, 1], [], []>} : vector<2x32xf32>, vector<32x128xf32>, vector<2x128xf32> -> vector<2x128xf32>
    %153 = arith.addf %151, %152 : vector<2x128xf32>
    %154 = vector.extract_strided_slice %153 {offsets = [0, 0], sizes = [2, 32], strides = [1, 1]} : vector<2x128xf32> to vector<2x32xf32>
    %cst_50 = arith.constant 0.000000e+00 : f32
    %155 = vector.broadcast %cst_50 : f32 to vector<2x32xf32>
    %156 = arith.subf %155, %154 : vector<2x32xf32>
    %157 = math.exp %156 : vector<2x32xf32>
    %cst_51 = arith.constant 1.000000e+00 : f32
    %158 = vector.broadcast %cst_51 : f32 to vector<2x32xf32>
    %159 = arith.addf %158, %157 : vector<2x32xf32>
    %cst_52 = arith.constant 1.000000e+00 : f32
    %160 = vector.broadcast %cst_52 : f32 to vector<2x32xf32>
    %161 = arith.divf %160, %159 : vector<2x32xf32>
    %162 = vector.extract_strided_slice %153 {offsets = [0, 32], sizes = [2, 32], strides = [1, 1]} : vector<2x128xf32> to vector<2x32xf32>
    %cst_53 = arith.constant 0.000000e+00 : f32
    %163 = vector.broadcast %cst_53 : f32 to vector<2x32xf32>
    %164 = arith.subf %163, %162 : vector<2x32xf32>
    %165 = math.exp %164 : vector<2x32xf32>
    %cst_54 = arith.constant 1.000000e+00 : f32
    %166 = vector.broadcast %cst_54 : f32 to vector<2x32xf32>
    %167 = arith.addf %166, %165 : vector<2x32xf32>
    %cst_55 = arith.constant 1.000000e+00 : f32
    %168 = vector.broadcast %cst_55 : f32 to vector<2x32xf32>
    %169 = arith.divf %168, %167 : vector<2x32xf32>
    %170 = vector.extract_strided_slice %153 {offsets = [0, 64], sizes = [2, 32], strides = [1, 1]} : vector<2x128xf32> to vector<2x32xf32>
    %171 = math.tanh %170 : vector<2x32xf32>
    %172 = vector.extract_strided_slice %153 {offsets = [0, 96], sizes = [2, 32], strides = [1, 1]} : vector<2x128xf32> to vector<2x32xf32>
    %cst_56 = arith.constant 0.000000e+00 : f32
    %173 = vector.broadcast %cst_56 : f32 to vector<2x32xf32>
    %174 = arith.subf %173, %172 : vector<2x32xf32>
    %175 = math.exp %174 : vector<2x32xf32>
    %cst_57 = arith.constant 1.000000e+00 : f32
    %176 = vector.broadcast %cst_57 : f32 to vector<2x32xf32>
    %177 = arith.addf %176, %175 : vector<2x32xf32>
    %cst_58 = arith.constant 1.000000e+00 : f32
    %178 = vector.broadcast %cst_58 : f32 to vector<2x32xf32>
    %179 = arith.divf %178, %177 : vector<2x32xf32>
    %180 = arith.mulf %169, %147 : vector<2x32xf32>
    %181 = arith.mulf %161, %171 : vector<2x32xf32>
    %182 = arith.addf %180, %181 : vector<2x32xf32>
    %183 = math.tanh %182 : vector<2x32xf32>
    %184 = arith.mulf %179, %183 : vector<2x32xf32>
    %185 = vector.extract_strided_slice %7 {offsets = [0, 5, 0], sizes = [2, 1, 128], strides = [1, 1, 1]} : vector<2x8x128xf32> to vector<2x1x128xf32>
    %186 = vector.shape_cast %185 : vector<2x1x128xf32> to vector<2x128xf32>
    %cst_59 = arith.constant dense<0.000000e+00> : vector<2x128xf32>
    %187 = tpu.matmul %184, %2, %cst_59 {dimension_numbers = #tpu.dot_dimension_numbers<[1], [0], [0], [1], [0, 0, 1, 1], [], []>} : vector<2x32xf32>, vector<32x128xf32>, vector<2x128xf32> -> vector<2x128xf32>
    %188 = arith.addf %186, %187 : vector<2x128xf32>
    %189 = vector.extract_strided_slice %188 {offsets = [0, 0], sizes = [2, 32], strides = [1, 1]} : vector<2x128xf32> to vector<2x32xf32>
    %cst_60 = arith.constant 0.000000e+00 : f32
    %190 = vector.broadcast %cst_60 : f32 to vector<2x32xf32>
    %191 = arith.subf %190, %189 : vector<2x32xf32>
    %192 = math.exp %191 : vector<2x32xf32>
    %cst_61 = arith.constant 1.000000e+00 : f32
    %193 = vector.broadcast %cst_61 : f32 to vector<2x32xf32>
    %194 = arith.addf %193, %192 : vector<2x32xf32>
    %cst_62 = arith.constant 1.000000e+00 : f32
    %195 = vector.broadcast %cst_62 : f32 to vector<2x32xf32>
    %196 = arith.divf %195, %194 : vector<2x32xf32>
    %197 = vector.extract_strided_slice %188 {offsets = [0, 32], sizes = [2, 32], strides = [1, 1]} : vector<2x128xf32> to vector<2x32xf32>
    %cst_63 = arith.constant 0.000000e+00 : f32
    %198 = vector.broadcast %cst_63 : f32 to vector<2x32xf32>
    %199 = arith.subf %198, %197 : vector<2x32xf32>
    %200 = math.exp %199 : vector<2x32xf32>
    %cst_64 = arith.constant 1.000000e+00 : f32
    %201 = vector.broadcast %cst_64 : f32 to vector<2x32xf32>
    %202 = arith.addf %201, %200 : vector<2x32xf32>
    %cst_65 = arith.constant 1.000000e+00 : f32
    %203 = vector.broadcast %cst_65 : f32 to vector<2x32xf32>
    %204 = arith.divf %203, %202 : vector<2x32xf32>
    %205 = vector.extract_strided_slice %188 {offsets = [0, 64], sizes = [2, 32], strides = [1, 1]} : vector<2x128xf32> to vector<2x32xf32>
    %206 = math.tanh %205 : vector<2x32xf32>
    %207 = vector.extract_strided_slice %188 {offsets = [0, 96], sizes = [2, 32], strides = [1, 1]} : vector<2x128xf32> to vector<2x32xf32>
    %cst_66 = arith.constant 0.000000e+00 : f32
    %208 = vector.broadcast %cst_66 : f32 to vector<2x32xf32>
    %209 = arith.subf %208, %207 : vector<2x32xf32>
    %210 = math.exp %209 : vector<2x32xf32>
    %cst_67 = arith.constant 1.000000e+00 : f32
    %211 = vector.broadcast %cst_67 : f32 to vector<2x32xf32>
    %212 = arith.addf %211, %210 : vector<2x32xf32>
    %cst_68 = arith.constant 1.000000e+00 : f32
    %213 = vector.broadcast %cst_68 : f32 to vector<2x32xf32>
    %214 = arith.divf %213, %212 : vector<2x32xf32>
    %215 = arith.mulf %204, %182 : vector<2x32xf32>
    %216 = arith.mulf %196, %206 : vector<2x32xf32>
    %217 = arith.addf %215, %216 : vector<2x32xf32>
    %218 = math.tanh %217 : vector<2x32xf32>
    %219 = arith.mulf %214, %218 : vector<2x32xf32>
    %220 = vector.extract_strided_slice %7 {offsets = [0, 6, 0], sizes = [2, 1, 128], strides = [1, 1, 1]} : vector<2x8x128xf32> to vector<2x1x128xf32>
    %221 = vector.shape_cast %220 : vector<2x1x128xf32> to vector<2x128xf32>
    %cst_69 = arith.constant dense<0.000000e+00> : vector<2x128xf32>
    %222 = tpu.matmul %219, %2, %cst_69 {dimension_numbers = #tpu.dot_dimension_numbers<[1], [0], [0], [1], [0, 0, 1, 1], [], []>} : vector<2x32xf32>, vector<32x128xf32>, vector<2x128xf32> -> vector<2x128xf32>
    %223 = arith.addf %221, %222 : vector<2x128xf32>
    %224 = vector.extract_strided_slice %223 {offsets = [0, 0], sizes = [2, 32], strides = [1, 1]} : vector<2x128xf32> to vector<2x32xf32>
    %cst_70 = arith.constant 0.000000e+00 : f32
    %225 = vector.broadcast %cst_70 : f32 to vector<2x32xf32>
    %226 = arith.subf %225, %224 : vector<2x32xf32>
    %227 = math.exp %226 : vector<2x32xf32>
    %cst_71 = arith.constant 1.000000e+00 : f32
    %228 = vector.broadcast %cst_71 : f32 to vector<2x32xf32>
    %229 = arith.addf %228, %227 : vector<2x32xf32>
    %cst_72 = arith.constant 1.000000e+00 : f32
    %230 = vector.broadcast %cst_72 : f32 to vector<2x32xf32>
    %231 = arith.divf %230, %229 : vector<2x32xf32>
    %232 = vector.extract_strided_slice %223 {offsets = [0, 32], sizes = [2, 32], strides = [1, 1]} : vector<2x128xf32> to vector<2x32xf32>
    %cst_73 = arith.constant 0.000000e+00 : f32
    %233 = vector.broadcast %cst_73 : f32 to vector<2x32xf32>
    %234 = arith.subf %233, %232 : vector<2x32xf32>
    %235 = math.exp %234 : vector<2x32xf32>
    %cst_74 = arith.constant 1.000000e+00 : f32
    %236 = vector.broadcast %cst_74 : f32 to vector<2x32xf32>
    %237 = arith.addf %236, %235 : vector<2x32xf32>
    %cst_75 = arith.constant 1.000000e+00 : f32
    %238 = vector.broadcast %cst_75 : f32 to vector<2x32xf32>
    %239 = arith.divf %238, %237 : vector<2x32xf32>
    %240 = vector.extract_strided_slice %223 {offsets = [0, 64], sizes = [2, 32], strides = [1, 1]} : vector<2x128xf32> to vector<2x32xf32>
    %241 = math.tanh %240 : vector<2x32xf32>
    %242 = vector.extract_strided_slice %223 {offsets = [0, 96], sizes = [2, 32], strides = [1, 1]} : vector<2x128xf32> to vector<2x32xf32>
    %cst_76 = arith.constant 0.000000e+00 : f32
    %243 = vector.broadcast %cst_76 : f32 to vector<2x32xf32>
    %244 = arith.subf %243, %242 : vector<2x32xf32>
    %245 = math.exp %244 : vector<2x32xf32>
    %cst_77 = arith.constant 1.000000e+00 : f32
    %246 = vector.broadcast %cst_77 : f32 to vector<2x32xf32>
    %247 = arith.addf %246, %245 : vector<2x32xf32>
    %cst_78 = arith.constant 1.000000e+00 : f32
    %248 = vector.broadcast %cst_78 : f32 to vector<2x32xf32>
    %249 = arith.divf %248, %247 : vector<2x32xf32>
    %250 = arith.mulf %239, %217 : vector<2x32xf32>
    %251 = arith.mulf %231, %241 : vector<2x32xf32>
    %252 = arith.addf %250, %251 : vector<2x32xf32>
    %253 = math.tanh %252 : vector<2x32xf32>
    %254 = arith.mulf %249, %253 : vector<2x32xf32>
    %255 = vector.extract_strided_slice %7 {offsets = [0, 7, 0], sizes = [2, 1, 128], strides = [1, 1, 1]} : vector<2x8x128xf32> to vector<2x1x128xf32>
    %256 = vector.shape_cast %255 : vector<2x1x128xf32> to vector<2x128xf32>
    %cst_79 = arith.constant dense<0.000000e+00> : vector<2x128xf32>
    %257 = tpu.matmul %254, %2, %cst_79 {dimension_numbers = #tpu.dot_dimension_numbers<[1], [0], [0], [1], [0, 0, 1, 1], [], []>} : vector<2x32xf32>, vector<32x128xf32>, vector<2x128xf32> -> vector<2x128xf32>
    %258 = arith.addf %256, %257 : vector<2x128xf32>
    %259 = vector.extract_strided_slice %258 {offsets = [0, 0], sizes = [2, 32], strides = [1, 1]} : vector<2x128xf32> to vector<2x32xf32>
    %cst_80 = arith.constant 0.000000e+00 : f32
    %260 = vector.broadcast %cst_80 : f32 to vector<2x32xf32>
    %261 = arith.subf %260, %259 : vector<2x32xf32>
    %262 = math.exp %261 : vector<2x32xf32>
    %cst_81 = arith.constant 1.000000e+00 : f32
    %263 = vector.broadcast %cst_81 : f32 to vector<2x32xf32>
    %264 = arith.addf %263, %262 : vector<2x32xf32>
    %cst_82 = arith.constant 1.000000e+00 : f32
    %265 = vector.broadcast %cst_82 : f32 to vector<2x32xf32>
    %266 = arith.divf %265, %264 : vector<2x32xf32>
    %267 = vector.extract_strided_slice %258 {offsets = [0, 32], sizes = [2, 32], strides = [1, 1]} : vector<2x128xf32> to vector<2x32xf32>
    %cst_83 = arith.constant 0.000000e+00 : f32
    %268 = vector.broadcast %cst_83 : f32 to vector<2x32xf32>
    %269 = arith.subf %268, %267 : vector<2x32xf32>
    %270 = math.exp %269 : vector<2x32xf32>
    %cst_84 = arith.constant 1.000000e+00 : f32
    %271 = vector.broadcast %cst_84 : f32 to vector<2x32xf32>
    %272 = arith.addf %271, %270 : vector<2x32xf32>
    %cst_85 = arith.constant 1.000000e+00 : f32
    %273 = vector.broadcast %cst_85 : f32 to vector<2x32xf32>
    %274 = arith.divf %273, %272 : vector<2x32xf32>
    %275 = vector.extract_strided_slice %258 {offsets = [0, 64], sizes = [2, 32], strides = [1, 1]} : vector<2x128xf32> to vector<2x32xf32>
    %276 = math.tanh %275 : vector<2x32xf32>
    %277 = vector.extract_strided_slice %258 {offsets = [0, 96], sizes = [2, 32], strides = [1, 1]} : vector<2x128xf32> to vector<2x32xf32>
    %cst_86 = arith.constant 0.000000e+00 : f32
    %278 = vector.broadcast %cst_86 : f32 to vector<2x32xf32>
    %279 = arith.subf %278, %277 : vector<2x32xf32>
    %280 = math.exp %279 : vector<2x32xf32>
    %cst_87 = arith.constant 1.000000e+00 : f32
    %281 = vector.broadcast %cst_87 : f32 to vector<2x32xf32>
    %282 = arith.addf %281, %280 : vector<2x32xf32>
    %cst_88 = arith.constant 1.000000e+00 : f32
    %283 = vector.broadcast %cst_88 : f32 to vector<2x32xf32>
    %284 = arith.divf %283, %282 : vector<2x32xf32>
    %285 = arith.mulf %274, %252 : vector<2x32xf32>
    %286 = arith.mulf %266, %276 : vector<2x32xf32>
    %287 = arith.addf %285, %286 : vector<2x32xf32>
    %288 = math.tanh %287 : vector<2x32xf32>
    %289 = arith.mulf %284, %288 : vector<2x32xf32>
    %c0_89 = arith.constant 0 : index
    %c0_90 = arith.constant 0 : index
    %290 = vector.load %arg5[%c0_89, %c0_90] : memref<32x4xf32, #tpu.memory_space<vmem>>, vector<32x4xf32>
    %cst_91 = arith.constant dense<0.000000e+00> : vector<2x4xf32>
    %291 = tpu.matmul %289, %290, %cst_91 {dimension_numbers = #tpu.dot_dimension_numbers<[1], [0], [0], [1], [0, 0, 1, 1], [], []>} : vector<2x32xf32>, vector<32x4xf32>, vector<2x4xf32> -> vector<2x4xf32>
    %c0_92 = arith.constant 0 : index
    %c0_93 = arith.constant 0 : index
    %292 = vector.load %arg6[%c0_92, %c0_93] : memref<1x4xf32, #tpu.memory_space<vmem>>, vector<1x4xf32>
    %293 = vector.broadcast %292 : vector<1x4xf32> to vector<2x4xf32>
    %294 = arith.addf %291, %293 : vector<2x4xf32>
    %c0_94 = arith.constant 0 : index
    %c0_95 = arith.constant 0 : index
    %295 = vector.load %arg7[%c0_94, %c0_95] : memref<2x4xf32, #tpu.memory_space<vmem>>, vector<2x4xf32>
    tpu.vector_store %arg7[%c0_94, %c0_95], %294 {strides = array<i32>} : memref<2x4xf32, #tpu.memory_space<vmem>>, vector<2x4xf32>,
    return
  }
  func.func @transform_0(%arg0: i32) -> (i32, i32) {
    %c0_i32 = arith.constant 0 : i32
    %c0_i32_0 = arith.constant 0 : i32
    return %arg0, %c0_i32 : i32, i32
  }
  func.func @transform_1(%arg0: i32) -> (i32, i32) {
    %c0_i32 = arith.constant 0 : i32
    %c0_i32_0 = arith.constant 0 : i32
    %c0_i32_1 = arith.constant 0 : i32
    return %c0_i32, %c0_i32_0 : i32, i32
  }
  func.func @transform_2(%arg0: i32) -> (i32, i32) {
    %c0_i32 = arith.constant 0 : i32
    %c0_i32_0 = arith.constant 0 : i32
    %c0_i32_1 = arith.constant 0 : i32
    return %c0_i32, %c0_i32_0 : i32, i32
  }
  func.func @transform_3(%arg0: i32) -> (i32, i32) {
    %c0_i32 = arith.constant 0 : i32
    %c0_i32_0 = arith.constant 0 : i32
    %c0_i32_1 = arith.constant 0 : i32
    return %c0_i32, %c0_i32_0 : i32, i32
  }
  func.func @transform_4(%arg0: i32) -> (i32, i32) {
    %c0_i32 = arith.constant 0 : i32
    %c0_i32_0 = arith.constant 0 : i32
    %c0_i32_1 = arith.constant 0 : i32
    return %c0_i32, %c0_i32_0 : i32, i32
  }
  func.func @transform_5(%arg0: i32) -> (i32, i32) {
    %c0_i32 = arith.constant 0 : i32
    %c0_i32_0 = arith.constant 0 : i32
    %c0_i32_1 = arith.constant 0 : i32
    return %c0_i32, %c0_i32_0 : i32, i32
  }
  func.func @transform_6(%arg0: i32) -> (i32, i32) {
    %c0_i32 = arith.constant 0 : i32
    %c0_i32_0 = arith.constant 0 : i32
    return %arg0, %c0_i32 : i32, i32
  }
}

</mosaic_0001>

<llo_original>
// kernel: tpu_custom_call.1
$region0: #{tpu_custom_call.1}
  #allocation0 [shape = 'u32[]', space=smem, size = 0x4, offset = 0x4, fixed_abs, tag = 'smem constant byte address 0x4 - core index']
  #allocation1 [shape = 'u32[144,128]{1,0:T(1,128)}', space=vmem, size = 0x12000, scoped, tag = 'internal scratch']
  %s0 = inlined_call_operand.hbm [shape: f32[16,16], index: 0, kind: input, shape index: {}]
  %s1 = inlined_call_operand.hbm [shape: f32[16,128], index: 1, kind: input, shape index: {}]
  %s2 = inlined_call_operand.vmem [shape: f32[32,128], index: 2, kind: input, shape index: {}]
  %s3 = inlined_call_operand.vmem [shape: f32[1,128], index: 3, kind: input, shape index: {}]
  %s4 = inlined_call_operand.vmem [shape: f32[32,4], index: 4, kind: input, shape index: {}]
  %s5 = inlined_call_operand.vmem [shape: f32[1,4], index: 5, kind: input, shape index: {}]
  %s6 = inlined_call_operand.hbm [shape: f32[2,4], index: 6, kind: output, shape index: {}]
  %s7 = sld [smem:[#allocation0]]
  $region42: #{tpu_custom_call.1} parent=0
    _
  %s9 = ssub.s32 1, %s7
  %s10 = scalar_select 0, %s9, %s7
  $region1: #{tpu_custom_call.1} parent=0
    #allocation2 [shape = 'u8[8192]{0}', space=vmem, size = 0x2000, scoped, tag = 'input window, operand 0, single buffered']
    #allocation3 [shape = 's32[1]{0}', space=sflag, size = 0x4, scoped, tag = 'scoped memory for tpu_custom_call.1']
    #allocation4 [shape = 's32[1]{0}', space=sflag, size = 0x4, scoped, tag = 'scoped memory for tpu_custom_call.1']
    #allocation5 [shape = 'u8[8192]{0}', space=vmem, size = 0x2000, scoped, tag = 'input window, operand 1, single buffered']
    #allocation6 [shape = 's32[1]{0}', space=sflag, size = 0x4, scoped, tag = 'scoped memory for tpu_custom_call.1']
    #allocation7 [shape = 'u8[1024]{0}', space=vmem, size = 0x400, scoped, tag = 'output window, operand 0, single buffered']
    %11 = vsyncpa [#allocation3], 0
    %12 = vsyncpa [#allocation6], 0
    %13 = vsyncpa [#allocation4], 0
    // Predicated region
    $region2: #{tpu_custom_call.1} parent=1 // pred_check
      _
    $region3: #{tpu_custom_call.1} parent=1 // pred_check_branch
      %15 = sbr.rel (0) target = $region5
    $region4: #{tpu_custom_call.1} parent=1 // pred_region
      %s17 = ssub.s32 256, 256
      %18 = vsyncadd [#allocation3], %s17
      %s19 = sshll.u32 [#allocation2], 4
      %s20 = int_to_ptr.vmem [resolvable:$true] %s19
      %25 = dma.hbm_to_vmem [thread:$0]  %s0, 256, %s20, [#allocation3], 128, 128, 8
    $region5: #{tpu_custom_call.1} parent=1 // pred_fallthru
      _
    // Predicated region
    $region6: #{tpu_custom_call.1} parent=1 // pred_check
      _
    $region7: #{tpu_custom_call.1} parent=1 // pred_check_branch
      %27 = sbr.rel (0) target = $region9
    $region8: #{tpu_custom_call.1} parent=1 // pred_region
      %s29 = ssub.s32 256, 256
      %30 = vsyncadd [#allocation6], %s29
      %s31 = sshll.u32 [#allocation5], 4
      %s32 = int_to_ptr.vmem [resolvable:$true] %s31
      %37 = dma.hbm_to_vmem [thread:$0]  %s1, 256, %s32, [#allocation6], 128, 128, 8
    $region9: #{tpu_custom_call.1} parent=1 // pred_fallthru
      _
    // Predicated region
    $region10: #{tpu_custom_call.1} parent=1 // pred_check
      _
    $region11: #{tpu_custom_call.1} parent=1 // pred_check_branch
      %39 = sbr.rel (0) target = $region13
    $region12: #{tpu_custom_call.1} parent=1 // pred_region
      _
    $region13: #{tpu_custom_call.1} parent=1 // pred_fallthru
      _
    // Predicated region
    $region14: #{tpu_custom_call.1} parent=1 // pred_check
      _
    $region15: #{tpu_custom_call.1} parent=1 // pred_check_branch
      %41 = sbr.rel (0) target = $region17
    $region16: #{tpu_custom_call.1} parent=1 // pred_region
      _
    $region17: #{tpu_custom_call.1} parent=1 // pred_fallthru
      _
    // Predicated region
    $region18: #{tpu_custom_call.1} parent=1 // pred_check
      _
    $region19: #{tpu_custom_call.1} parent=1 // pred_check_branch
      %43 = sbr.rel (0) target = $region21
    $region20: #{tpu_custom_call.1} parent=1 // pred_region
      _
    $region21: #{tpu_custom_call.1} parent=1 // pred_fallthru
      _
    // Predicated region
    $region22: #{tpu_custom_call.1} parent=1 // pred_check
      _
    $region23: #{tpu_custom_call.1} parent=1 // pred_check_branch
      %45 = sbr.rel (0) target = $region25
    $region24: #{tpu_custom_call.1} parent=1 // pred_region
      _
    $region25: #{tpu_custom_call.1} parent=1 // pred_fallthru
      _
    // Predicated region
    $region26: #{tpu_custom_call.1} parent=1 // pred_check
      _
    $region27: #{tpu_custom_call.1} parent=1 // pred_check_branch
      %47 = sbr.rel (0) target = $region29
    $region28: #{tpu_custom_call.1} parent=1 // pred_region
      %48 = dma.done [#allocation3], 256
    $region29: #{tpu_custom_call.1} parent=1 // pred_fallthru
      _
    // Predicated region
    $region30: #{tpu_custom_call.1} parent=1 // pred_check
      _
    $region31: #{tpu_custom_call.1} parent=1 // pred_check_branch
      %50 = sbr.rel (0) target = $region33
    $region32: #{tpu_custom_call.1} parent=1 // pred_region
      %51 = dma.done [#allocation6], 256
    $region33: #{tpu_custom_call.1} parent=1 // pred_fallthru
      _
    %v52 = vld [vmem:[#allocation2] sm:$0xff]
    %v53 = vld [vmem:[#allocation2 + $0x8] sm:$0xff]
    %v54 = vld [vmem:[#allocation5] sm:$0xff]
    %v55 = vld [vmem:[#allocation5 + $0x8] sm:$0xff]
    %v56 = vld [vmem:[%s2] sm:$0xff]
    %v57 = vld [vmem:[%s2 + $0x8] sm:$0xff]
    %v58 = vld [vmem:[%s2 + $0x10] sm:$0xff]
    %v59 = vld [vmem:[%s2 + $0x18] sm:$0xff]
    %v60 = vld [vmem:[%s3] sm:$0x1]
    %v62 = vlaneseq
    %v63 = vshrl.u32 %v62, 7
    %v64 = vsub.s32 0, %v63
    %v65 = vrot.slane %v60, %v64
    %vm67 = vcmask 130048
    %v69 = vsel %vm67, %v52, 0
    %v72 = vsel %vm67, %v53, 0
    %74 = vmatprep.subr.mxu0 0.0
    %75 = vmatpush1.msra.mxu0 0.0
    %76 = vmatprep.subr.mxu0 0.0
    %77 = vmatpush1.msra.mxu0 0.0
    %78 = vmatprep.subr.mxu0 0.0
    %79 = vmatpush1.msra.mxu0 0.0
    %80 = vmatprep.subr.mxu0 0.0
    %81 = vmatpush1.msra.mxu0 0.0
    %82 = vmatprep.subr.mxu0 0.0
    %83 = vmatpush1.msra.mxu0 0.0
    %84 = vmatprep.subr.mxu0 0.0
    %85 = vmatpush1.msra.mxu0 0.0
    %86 = vmatprep.subr.mxu0 0.0
    %87 = vmatpush1.msra.mxu0 0.0
    %88 = vmatprep.subr.mxu0 0.0
    %89 = vmatpush1.msra.mxu0 0.0
    %90 = vmatprep.subr.mxu0 0.0
    %91 = vmatpush1.msra.mxu0 0.0
    %92 = vmatprep.subr.mxu0 0.0
    %93 = vmatpush1.msra.mxu0 0.0
    %94 = vmatprep.subr.mxu0 0.0
    %95 = vmatpush1.msra.mxu0 0.0
    %96 = vmatprep.subr.mxu0 0.0
    %97 = vmatpush1.msra.mxu0 0.0
    %98 = vmatprep.subr.mxu0 0.0
    %99 = vmatpush1.msra.mxu0 0.0
    %100 = vmatprep.subr.mxu0 0.0
    %101 = vmatpush1.msra.mxu0 0.0
    %102 = vmatprep.subr.mxu0 0.0
    %103 = vmatpush1.msra.mxu0 %v55
    %104 = vmatprep.subr.mxu0 0.0
    %105 = vmatpush1.msra.mxu0 %v54
    %106 = vmatprep.subr.mxu0 0.0
    %107 = vmatpush2.msra.mxu0 0.0
    %108 = vmatprep.subr.mxu0 0.0
    %109 = vmatpush2.msra.mxu0 0.0
    %110 = vmatprep.subr.mxu0 0.0
    %111 = vmatpush2.msra.mxu0 0.0
    %112 = vmatprep.subr.mxu0 0.0
    %113 = vmatpush2.msra.mxu0 0.0
    %114 = vmatprep.subr.mxu0 0.0
    %115 = vmatpush2.msra.mxu0 0.0
    %116 = vmatprep.subr.mxu0 0.0
    %117 = vmatpush2.msra.mxu0 0.0
    %118 = vmatprep.subr.mxu0 0.0
    %119 = vmatpush2.msra.mxu0 0.0
    %120 = vmatprep.subr.mxu0 0.0
    %121 = vmatpush2.msra.mxu0 0.0
    %122 = vmatprep.subr.mxu0 0.0
    %123 = vmatpush2.msra.mxu0 0.0
    %124 = vmatprep.subr.mxu0 0.0
    %125 = vmatpush2.msra.mxu0 0.0
    %126 = vmatprep.subr.mxu0 0.0
    %127 = vmatpush2.msra.mxu0 0.0
    %128 = vmatprep.subr.mxu0 0.0
    %129 = vmatpush2.msra.mxu0 0.0
    %130 = vmatprep.subr.mxu0 0.0
    %131 = vmatpush2.msra.mxu0 0.0
    %132 = vmatprep.subr.mxu0 0.0
    %133 = vmatpush2.msra.mxu0 0.0
    %134 = vmatprep.subr.mxu0 0.0
    %135 = vmatpush2.msra.mxu0 0.0
    %136 = vmatprep.subr.mxu0 0.0
    %137 = vmatpush2.msra.mxu0 0.0
    %138 = vmatprep.mubr.f32.mxu0 0.0
    %139 = vmatmul.mubr.f32.gmra.mxu0 %v69
    %v140 = vpop.f32.mrf.mxu0
    %v141 = vadd.f32 %v65, %v140
    %v142 = vpop.f32.mrf.mxu0
    %143 = vmatprep.mubr.f32.mxu0 0.0
    %144 = vmatmul.mubr.f32.gmra.mxu0 %v72
    %v145 = vpop.f32.mrf.mxu0
    %v146 = vadd.f32 %v65, %v145
    %v147 = vpop.f32.mrf.mxu0
    %148 = vdwg.mxu0
    %vm149 = vcmask 261120
    %v151 = vsel %vm149, 0.0, 0
    %153 = vmatprep.subr.mxu0 0.0
    %154 = vmatpush1.msra.mxu0 0.0
    %155 = vmatprep.subr.mxu0 0.0
    %156 = vmatpush1.msra.mxu0 0.0
    %157 = vmatprep.subr.mxu0 0.0
    %158 = vmatpush1.msra.mxu0 0.0
    %159 = vmatprep.subr.mxu0 0.0
    %160 = vmatpush1.msra.mxu0 0.0
    %161 = vmatprep.subr.mxu0 0.0
    %162 = vmatpush1.msra.mxu0 0.0
    %163 = vmatprep.subr.mxu0 0.0
    %164 = vmatpush1.msra.mxu0 0.0
    %165 = vmatprep.subr.mxu0 0.0
    %166 = vmatpush1.msra.mxu0 0.0
    %167 = vmatprep.subr.mxu0 0.0
    %168 = vmatpush1.msra.mxu0 0.0
    %169 = vmatprep.subr.mxu0 0.0
    %170 = vmatpush1.msra.mxu0 0.0
    %171 = vmatprep.subr.mxu0 0.0
    %172 = vmatpush1.msra.mxu0 0.0
    %173 = vmatprep.subr.mxu0 0.0
    %174 = vmatpush1.msra.mxu0 0.0
    %175 = vmatprep.subr.mxu0 0.0
    %176 = vmatpush1.msra.mxu0 0.0
    %177 = vmatprep.subr.mxu0 0.0
    %178 = vmatpush1.msra.mxu0 %v59
    %179 = vmatprep.subr.mxu0 0.0
    %180 = vmatpush1.msra.mxu0 %v58
    %181 = vmatprep.subr.mxu0 0.0
    %182 = vmatpush1.msra.mxu0 %v57
    %183 = vmatprep.subr.mxu0 0.0
    %184 = vmatpush1.msra.mxu0 %v56
    %185 = vmatprep.subr.mxu0 0.0
    %186 = vmatpush2.msra.mxu0 0.0
    %187 = vmatprep.subr.mxu0 0.0
    %188 = vmatpush2.msra.mxu0 0.0
    %189 = vmatprep.subr.mxu0 0.0
    %190 = vmatpush2.msra.mxu0 0.0
    %191 = vmatprep.subr.mxu0 0.0
    %192 = vmatpush2.msra.mxu0 0.0
    %193 = vmatprep.subr.mxu0 0.0
    %194 = vmatpush2.msra.mxu0 0.0
    %195 = vmatprep.subr.mxu0 0.0
    %196 = vmatpush2.msra.mxu0 0.0
    %197 = vmatprep.subr.mxu0 0.0
    %198 = vmatpush2.msra.mxu0 0.0
    %199 = vmatprep.subr.mxu0 0.0
    %200 = vmatpush2.msra.mxu0 0.0
    %201 = vmatprep.subr.mxu0 0.0
    %202 = vmatpush2.msra.mxu0 0.0
    %203 = vmatprep.subr.mxu0 0.0
    %204 = vmatpush2.msra.mxu0 0.0
    %205 = vmatprep.subr.mxu0 0.0
    %206 = vmatpush2.msra.mxu0 0.0
    %207 = vmatprep.subr.mxu0 0.0
    %208 = vmatpush2.msra.mxu0 0.0
    %209 = vmatprep.subr.mxu0 0.0
    %210 = vmatpush2.msra.mxu0 0.0
    %211 = vmatprep.subr.mxu0 0.0
    %212 = vmatpush2.msra.mxu0 0.0
    %213 = vmatprep.subr.mxu0 0.0
    %214 = vmatpush2.msra.mxu0 0.0
    %215 = vmatprep.subr.mxu0 0.0
    %216 = vmatpush2.msra.mxu0 0.0
    %217 = vmatprep.mubr.f32.mxu0 0.0
    %218 = vmatmul.mubr.f32.gmra.mxu0 %v151
    %v219 = vpop.f32.mrf.mxu0
    %v220 = vadd.f32 0.0, %v219
    %v221 = vpop.f32.mrf.mxu0
    %222 = vdwg.mxu0
    %v224 = vrot.slane %v220, 1
    %v227 = vadd.f32 %v141, %v220
    %v228 = vadd.f32 %v146, %v224
    %v229 = vsub.f32 0.0, %v227
    %v230 = vsub.f32 0.0, %v228
    %v231 = vmul.f32 %v229, 1.442695
    %v232 = vpow.pop %v231
    %v233 = vmul.f32 %v230, 1.442695
    %v234 = vpow.pop %v233
    %v235 = vadd.f32 %v232, 1.0
    %v236 = vadd.f32 %v234, 1.0
    %v237 = vrcp.pop %v235
    %v238 = vmul.f32 1.0, %v237
    %v239 = vrcp.pop %v236
    %v240 = vmul.f32 1.0, %v239
    %v241 = vtanh.pop %v227
    %v242 = vtanh.pop %v228
    %v243 = vmul.f32 %v238, 0.0
    %v244 = vmul.f32 %v240, 0.0
    %247 = vrot.lane.b32.xlu0 %v241, 64
    %v248 = vpop.permute.xlu0 %247
    %249 = vrot.lane.b32.xlu0 %v242, 64
    %v250 = vpop.permute.xlu0 %249
    %v253 = vmul.f32 %v238, %v248
    %v254 = vmul.f32 %v240, %v250
    %257 = vrot.lane.b32.xlu0 %v253, 32
    %v258 = vpop.permute.xlu0 %257
    %259 = vrot.lane.b32.xlu0 %v254, 32
    %v260 = vpop.permute.xlu0 %259
    %v263 = vadd.f32 %v243, %v258
    %v264 = vadd.f32 %v244, %v260
    %v265 = vtanh.pop %v263
    %v266 = vtanh.pop %v264
    %269 = vrot.lane.b32.xlu0 %v265, 64
    %v270 = vpop.permute.xlu0 %269
    %271 = vrot.lane.b32.xlu0 %v266, 64
    %v272 = vpop.permute.xlu0 %271
    %v275 = vmul.f32 %v238, %v270
    %v276 = vmul.f32 %v240, %v272
    %v279 = vrot.slane %v276, 7
    %vm280 = vcmask 1041409
    %v281 = vsel %vm280, %v279, %v275
    %282 = vrot.lane.b32.xlu0 %v281, 32
    %v283 = vpop.permute.xlu0 %282
    %v284 = vsel %vm149, %v283, 0
    %286 = vmatprep.subr.mxu0 0.0
    %287 = vmatpush1.msra.mxu0 0.0
    %288 = vmatprep.subr.mxu0 0.0
    %289 = vmatpush1.msra.mxu0 0.0
    %290 = vmatprep.subr.mxu0 0.0
    %291 = vmatpush1.msra.mxu0 0.0
    %292 = vmatprep.subr.mxu0 0.0
    %293 = vmatpush1.msra.mxu0 0.0
    %294 = vmatprep.subr.mxu0 0.0
    %295 = vmatpush1.msra.mxu0 0.0
    %296 = vmatprep.subr.mxu0 0.0
    %297 = vmatpush1.msra.mxu0 0.0
    %298 = vmatprep.subr.mxu0 0.0
    %299 = vmatpush1.msra.mxu0 0.0
    %300 = vmatprep.subr.mxu0 0.0
    %301 = vmatpush1.msra.mxu0 0.0
    %302 = vmatprep.subr.mxu0 0.0
    %303 = vmatpush1.msra.mxu0 0.0
    %304 = vmatprep.subr.mxu0 0.0
    %305 = vmatpush1.msra.mxu0 0.0
    %306 = vmatprep.subr.mxu0 0.0
    %307 = vmatpush1.msra.mxu0 0.0
    %308 = vmatprep.subr.mxu0 0.0
    %309 = vmatpush1.msra.mxu0 0.0
    %310 = vmatprep.subr.mxu0 0.0
    %311 = vmatpush1.msra.mxu0 %v59
    %312 = vmatprep.subr.mxu0 0.0
    %313 = vmatpush1.msra.mxu0 %v58
    %314 = vmatprep.subr.mxu0 0.0
    %315 = vmatpush1.msra.mxu0 %v57
    %316 = vmatprep.subr.mxu0 0.0
    %317 = vmatpush1.msra.mxu0 %v56
    %318 = vmatprep.subr.mxu0 0.0
    %319 = vmatpush2.msra.mxu0 0.0
    %320 = vmatprep.subr.mxu0 0.0
    %321 = vmatpush2.msra.mxu0 0.0
    %322 = vmatprep.subr.mxu0 0.0
    %323 = vmatpush2.msra.mxu0 0.0
    %324 = vmatprep.subr.mxu0 0.0
    %325 = vmatpush2.msra.mxu0 0.0
    %326 = vmatprep.subr.mxu0 0.0
    %327 = vmatpush2.msra.mxu0 0.0
    %328 = vmatprep.subr.mxu0 0.0
    %329 = vmatpush2.msra.mxu0 0.0
    %330 = vmatprep.subr.mxu0 0.0
    %331 = vmatpush2.msra.mxu0 0.0
    %332 = vmatprep.subr.mxu0 0.0
    %333 = vmatpush2.msra.mxu0 0.0
    %334 = vmatprep.subr.mxu0 0.0
    %335 = vmatpush2.msra.mxu0 0.0
    %336 = vmatprep.subr.mxu0 0.0
    %337 = vmatpush2.msra.mxu0 0.0
    %338 = vmatprep.subr.mxu0 0.0
    %339 = vmatpush2.msra.mxu0 0.0
    %340 = vmatprep.subr.mxu0 0.0
    %341 = vmatpush2.msra.mxu0 0.0
    %342 = vmatprep.subr.mxu0 0.0
    %343 = vmatpush2.msra.mxu0 0.0
    %344 = vmatprep.subr.mxu0 0.0
    %345 = vmatpush2.msra.mxu0 0.0
    %346 = vmatprep.subr.mxu0 0.0
    %347 = vmatpush2.msra.mxu0 0.0
    %348 = vmatprep.subr.mxu0 0.0
    %349 = vmatpush2.msra.mxu0 0.0
    %350 = vmatprep.mubr.f32.mxu0 0.0
    %351 = vmatmul.mubr.f32.gmra.mxu0 %v284
    %v352 = vpop.f32.mrf.mxu0
    %v353 = vadd.f32 0.0, %v352
    %v354 = vpop.f32.mrf.mxu0
    %355 = vdwg.mxu0
    %v357 = vrot.slane %v353, 7
    %v360 = vadd.f32 %v141, %v357
    %v361 = vadd.f32 %v146, %v353
    %v362 = vsub.f32 0.0, %v360
    %v363 = vsub.f32 0.0, %v361
    %v364 = vmul.f32 %v362, 1.442695
    %v365 = vpow.pop %v364
    %v366 = vmul.f32 %v363, 1.442695
    %v367 = vpow.pop %v366
    %v368 = vadd.f32 %v365, 1.0
    %v369 = vadd.f32 %v367, 1.0
    %v370 = vrcp.pop %v368
    %v371 = vmul.f32 1.0, %v370
    %v372 = vrcp.pop %v369
    %v373 = vmul.f32 1.0, %v372
    %v374 = vtanh.pop %v360
    %v375 = vtanh.pop %v361
    %v378 = vrot.slane %v263, 7
    %v379 = vrot.slane %v264, 7
    %v382 = vmul.f32 %v371, %v378
    %v383 = vmul.f32 %v373, %v379
    %386 = vrot.lane.b32.xlu0 %v374, 64
    %v387 = vpop.permute.xlu0 %386
    %388 = vrot.lane.b32.xlu0 %v375, 64
    %v389 = vpop.permute.xlu0 %388
    %v392 = vmul.f32 %v371, %v387
    %v393 = vmul.f32 %v373, %v389
    %396 = vrot.lane.b32.xlu0 %v392, 32
    %v397 = vpop.permute.xlu0 %396
    %398 = vrot.lane.b32.xlu0 %v393, 32
    %v399 = vpop.permute.xlu0 %398
    %v402 = vadd.f32 %v382, %v397
    %v403 = vadd.f32 %v383, %v399
    %v404 = vtanh.pop %v402
    %v405 = vtanh.pop %v403
    %408 = vrot.lane.b32.xlu0 %v404, 64
    %v409 = vpop.permute.xlu0 %408
    %410 = vrot.lane.b32.xlu0 %v405, 64
    %v411 = vpop.permute.xlu0 %410
    %v414 = vmul.f32 %v371, %v409
    %v415 = vmul.f32 %v373, %v411
    %v418 = vrot.slane %v414, 1
    %v419 = vsel %vm280, %v415, %v418
    %420 = vrot.lane.b32.xlu0 %v419, 32
    %v421 = vpop.permute.xlu0 %420
    %v422 = vsel %vm149, %v421, 0
    %424 = vmatprep.subr.mxu0 0.0
    %425 = vmatpush1.msra.mxu0 0.0
    %426 = vmatprep.subr.mxu0 0.0
    %427 = vmatpush1.msra.mxu0 0.0
    %428 = vmatprep.subr.mxu0 0.0
    %429 = vmatpush1.msra.mxu0 0.0
    %430 = vmatprep.subr.mxu0 0.0
    %431 = vmatpush1.msra.mxu0 0.0
    %432 = vmatprep.subr.mxu0 0.0
    %433 = vmatpush1.msra.mxu0 0.0
    %434 = vmatprep.subr.mxu0 0.0
    %435 = vmatpush1.msra.mxu0 0.0
    %436 = vmatprep.subr.mxu0 0.0
    %437 = vmatpush1.msra.mxu0 0.0
    %438 = vmatprep.subr.mxu0 0.0
    %439 = vmatpush1.msra.mxu0 0.0
    %440 = vmatprep.subr.mxu0 0.0
    %441 = vmatpush1.msra.mxu0 0.0
    %442 = vmatprep.subr.mxu0 0.0
    %443 = vmatpush1.msra.mxu0 0.0
    %444 = vmatprep.subr.mxu0 0.0
    %445 = vmatpush1.msra.mxu0 0.0
    %446 = vmatprep.subr.mxu0 0.0
    %447 = vmatpush1.msra.mxu0 0.0
    %448 = vmatprep.subr.mxu0 0.0
    %449 = vmatpush1.msra.mxu0 %v59
    %450 = vmatprep.subr.mxu0 0.0
    %451 = vmatpush1.msra.mxu0 %v58
    %452 = vmatprep.subr.mxu0 0.0
    %453 = vmatpush1.msra.mxu0 %v57
    %454 = vmatprep.subr.mxu0 0.0
    %455 = vmatpush1.msra.mxu0 %v56
    %456 = vmatprep.subr.mxu0 0.0
    %457 = vmatpush2.msra.mxu0 0.0
    %458 = vmatprep.subr.mxu0 0.0
    %459 = vmatpush2.msra.mxu0 0.0
    %460 = vmatprep.subr.mxu0 0.0
    %461 = vmatpush2.msra.mxu0 0.0
    %462 = vmatprep.subr.mxu0 0.0
    %463 = vmatpush2.msra.mxu0 0.0
    %464 = vmatprep.subr.mxu0 0.0
    %465 = vmatpush2.msra.mxu0 0.0
    %466 = vmatprep.subr.mxu0 0.0
    %467 = vmatpush2.msra.mxu0 0.0
    %468 = vmatprep.subr.mxu0 0.0
    %469 = vmatpush2.msra.mxu0 0.0
    %470 = vmatprep.subr.mxu0 0.0
    %471 = vmatpush2.msra.mxu0 0.0
    %472 = vmatprep.subr.mxu0 0.0
    %473 = vmatpush2.msra.mxu0 0.0
    %474 = vmatprep.subr.mxu0 0.0
    %475 = vmatpush2.msra.mxu0 0.0
    %476 = vmatprep.subr.mxu0 0.0
    %477 = vmatpush2.msra.mxu0 0.0
    %478 = vmatprep.subr.mxu0 0.0
    %479 = vmatpush2.msra.mxu0 0.0
    %480 = vmatprep.subr.mxu0 0.0
    %481 = vmatpush2.msra.mxu0 0.0
    %482 = vmatprep.subr.mxu0 0.0
    %483 = vmatpush2.msra.mxu0 0.0
    %484 = vmatprep.subr.mxu0 0.0
    %485 = vmatpush2.msra.mxu0 0.0
    %486 = vmatprep.subr.mxu0 0.0
    %487 = vmatpush2.msra.mxu0 0.0
    %488 = vmatprep.mubr.f32.mxu0 0.0
    %489 = vmatmul.mubr.f32.gmra.mxu0 %v422
    %v490 = vpop.f32.mrf.mxu0
    %v491 = vadd.f32 0.0, %v490
    %v492 = vpop.f32.mrf.mxu0
    %493 = vdwg.mxu0
    %v495 = vrot.slane %v491, 6
    %v496 = vrot.slane %v491, 7
    %v499 = vadd.f32 %v141, %v495
    %v500 = vadd.f32 %v146, %v496
    %v501 = vsub.f32 0.0, %v499
    %v502 = vsub.f32 0.0, %v500
    %v503 = vmul.f32 %v501, 1.442695
    %v504 = vpow.pop %v503
    %v505 = vmul.f32 %v502, 1.442695
    %v506 = vpow.pop %v505
    %v507 = vadd.f32 %v504, 1.0
    %v508 = vadd.f32 %v506, 1.0
    %v509 = vrcp.pop %v507
    %v510 = vmul.f32 1.0, %v509
    %v511 = vrcp.pop %v508
    %v512 = vmul.f32 1.0, %v511
    %v513 = vtanh.pop %v499
    %v514 = vtanh.pop %v500
    %v517 = vrot.slane %v402, 7
    %v518 = vrot.slane %v403, 7
    %v521 = vmul.f32 %v510, %v517
    %v522 = vmul.f32 %v512, %v518
    %525 = vrot.lane.b32.xlu0 %v513, 64
    %v526 = vpop.permute.xlu0 %525
    %527 = vrot.lane.b32.xlu0 %v514, 64
    %v528 = vpop.permute.xlu0 %527
    %v531 = vmul.f32 %v510, %v526
    %v532 = vmul.f32 %v512, %v528
    %535 = vrot.lane.b32.xlu0 %v531, 32
    %v536 = vpop.permute.xlu0 %535
    %537 = vrot.lane.b32.xlu0 %v532, 32
    %v538 = vpop.permute.xlu0 %537
    %v541 = vadd.f32 %v521, %v536
    %v542 = vadd.f32 %v522, %v538
    %v543 = vtanh.pop %v541
    %v544 = vtanh.pop %v542
    %547 = vrot.lane.b32.xlu0 %v543, 64
    %v548 = vpop.permute.xlu0 %547
    %549 = vrot.lane.b32.xlu0 %v544, 64
    %v550 = vpop.permute.xlu0 %549
    %v553 = vmul.f32 %v510, %v548
    %v554 = vmul.f32 %v512, %v550
    %v557 = vrot.slane %v553, 2
    %v558 = vrot.slane %v554, 1
    %v559 = vsel %vm280, %v558, %v557
    %560 = vrot.lane.b32.xlu0 %v559, 32
    %v561 = vpop.permute.xlu0 %560
    %v562 = vsel %vm149, %v561, 0
    %564 = vmatprep.subr.mxu0 0.0
    %565 = vmatpush1.msra.mxu0 0.0
    %566 = vmatprep.subr.mxu0 0.0
    %567 = vmatpush1.msra.mxu0 0.0
    %568 = vmatprep.subr.mxu0 0.0
    %569 = vmatpush1.msra.mxu0 0.0
    %570 = vmatprep.subr.mxu0 0.0
    %571 = vmatpush1.msra.mxu0 0.0
    %572 = vmatprep.subr.mxu0 0.0
    %573 = vmatpush1.msra.mxu0 0.0
    %574 = vmatprep.subr.mxu0 0.0
    %575 = vmatpush1.msra.mxu0 0.0
    %576 = vmatprep.subr.mxu0 0.0
    %577 = vmatpush1.msra.mxu0 0.0
    %578 = vmatprep.subr.mxu0 0.0
    %579 = vmatpush1.msra.mxu0 0.0
    %580 = vmatprep.subr.mxu0 0.0
    %581 = vmatpush1.msra.mxu0 0.0
    %582 = vmatprep.subr.mxu0 0.0
    %583 = vmatpush1.msra.mxu0 0.0
    %584 = vmatprep.subr.mxu0 0.0
    %585 = vmatpush1.msra.mxu0 0.0
    %586 = vmatprep.subr.mxu0 0.0
    %587 = vmatpush1.msra.mxu0 0.0
    %588 = vmatprep.subr.mxu0 0.0
    %589 = vmatpush1.msra.mxu0 %v59
    %590 = vmatprep.subr.mxu0 0.0
    %591 = vmatpush1.msra.mxu0 %v58
    %592 = vmatprep.subr.mxu0 0.0
    %593 = vmatpush1.msra.mxu0 %v57
    %594 = vmatprep.subr.mxu0 0.0
    %595 = vmatpush1.msra.mxu0 %v56
    %596 = vmatprep.subr.mxu0 0.0
    %597 = vmatpush2.msra.mxu0 0.0
    %598 = vmatprep.subr.mxu0 0.0
    %599 = vmatpush2.msra.mxu0 0.0
    %600 = vmatprep.subr.mxu0 0.0
    %601 = vmatpush2.msra.mxu0 0.0
    %602 = vmatprep.subr.mxu0 0.0
    %603 = vmatpush2.msra.mxu0 0.0
    %604 = vmatprep.subr.mxu0 0.0
    %605 = vmatpush2.msra.mxu0 0.0
    %606 = vmatprep.subr.mxu0 0.0
    %607 = vmatpush2.msra.mxu0 0.0
    %608 = vmatprep.subr.mxu0 0.0
    %609 = vmatpush2.msra.mxu0 0.0
    %610 = vmatprep.subr.mxu0 0.0
    %611 = vmatpush2.msra.mxu0 0.0
    %612 = vmatprep.subr.mxu0 0.0
    %613 = vmatpush2.msra.mxu0 0.0
    %614 = vmatprep.subr.mxu0 0.0
    %615 = vmatpush2.msra.mxu0 0.0
    %616 = vmatprep.subr.mxu0 0.0
    %617 = vmatpush2.msra.mxu0 0.0
    %618 = vmatprep.subr.mxu0 0.0
    %619 = vmatpush2.msra.mxu0 0.0
    %620 = vmatprep.subr.mxu0 0.0
    %621 = vmatpush2.msra.mxu0 0.0
    %622 = vmatprep.subr.mxu0 0.0
    %623 = vmatpush2.msra.mxu0 0.0
    %624 = vmatprep.subr.mxu0 0.0
    %625 = vmatpush2.msra.mxu0 0.0
    %626 = vmatprep.subr.mxu0 0.0
    %627 = vmatpush2.msra.mxu0 0.0
    %628 = vmatprep.mubr.f32.mxu0 0.0
    %629 = vmatmul.mubr.f32.gmra.mxu0 %v562
    %v630 = vpop.f32.mrf.mxu0
    %v631 = vadd.f32 0.0, %v630
    %v632 = vpop.f32.mrf.mxu0
    %633 = vdwg.mxu0
    %v635 = vrot.slane %v631, 5
    %v636 = vrot.slane %v631, 6
    %v639 = vadd.f32 %v141, %v635
    %v640 = vadd.f32 %v146, %v636
    %v641 = vsub.f32 0.0, %v639
    %v642 = vsub.f32 0.0, %v640
    %v643 = vmul.f32 %v641, 1.442695
    %v644 = vpow.pop %v643
    %v645 = vmul.f32 %v642, 1.442695
    %v646 = vpow.pop %v645
    %v647 = vadd.f32 %v644, 1.0
    %v648 = vadd.f32 %v646, 1.0
    %v649 = vrcp.pop %v647
    %v650 = vmul.f32 1.0, %v649
    %v651 = vrcp.pop %v648
    %v652 = vmul.f32 1.0, %v651
    %v653 = vtanh.pop %v639
    %v654 = vtanh.pop %v640
    %v657 = vrot.slane %v541, 7
    %v658 = vrot.slane %v542, 7
    %v661 = vmul.f32 %v650, %v657
    %v662 = vmul.f32 %v652, %v658
    %665 = vrot.lane.b32.xlu0 %v653, 64
    %v666 = vpop.permute.xlu0 %665
    %667 = vrot.lane.b32.xlu0 %v654, 64
    %v668 = vpop.permute.xlu0 %667
    %v671 = vmul.f32 %v650, %v666
    %v672 = vmul.f32 %v652, %v668
    %675 = vrot.lane.b32.xlu0 %v671, 32
    %v676 = vpop.permute.xlu0 %675
    %677 = vrot.lane.b32.xlu0 %v672, 32
    %v678 = vpop.permute.xlu0 %677
    %v681 = vadd.f32 %v661, %v676
    %v682 = vadd.f32 %v662, %v678
    %v683 = vtanh.pop %v681
    %v684 = vtanh.pop %v682
    %687 = vrot.lane.b32.xlu0 %v683, 64
    %v688 = vpop.permute.xlu0 %687
    %689 = vrot.lane.b32.xlu0 %v684, 64
    %v690 = vpop.permute.xlu0 %689
    %v693 = vmul.f32 %v650, %v688
    %v694 = vmul.f32 %v652, %v690
    %v697 = vrot.slane %v693, 3
    %v698 = vrot.slane %v694, 2
    %v699 = vsel %vm280, %v698, %v697
    %700 = vrot.lane.b32.xlu0 %v699, 32
    %v701 = vpop.permute.xlu0 %700
    %v702 = vsel %vm149, %v701, 0
    %704 = vmatprep.subr.mxu0 0.0
    %705 = vmatpush1.msra.mxu0 0.0
    %706 = vmatprep.subr.mxu0 0.0
    %707 = vmatpush1.msra.mxu0 0.0
    %708 = vmatprep.subr.mxu0 0.0
    %709 = vmatpush1.msra.mxu0 0.0
    %710 = vmatprep.subr.mxu0 0.0
    %711 = vmatpush1.msra.mxu0 0.0
    %712 = vmatprep.subr.mxu0 0.0
    %713 = vmatpush1.msra.mxu0 0.0
    %714 = vmatprep.subr.mxu0 0.0
    %715 = vmatpush1.msra.mxu0 0.0
    %716 = vmatprep.subr.mxu0 0.0
    %717 = vmatpush1.msra.mxu0 0.0
    %718 = vmatprep.subr.mxu0 0.0
    %719 = vmatpush1.msra.mxu0 0.0
    %720 = vmatprep.subr.mxu0 0.0
    %721 = vmatpush1.msra.mxu0 0.0
    %722 = vmatprep.subr.mxu0 0.0
    %723 = vmatpush1.msra.mxu0 0.0
    %724 = vmatprep.subr.mxu0 0.0
    %725 = vmatpush1.msra.mxu0 0.0
    %726 = vmatprep.subr.mxu0 0.0
    %727 = vmatpush1.msra.mxu0 0.0
    %728 = vmatprep.subr.mxu0 0.0
    %729 = vmatpush1.msra.mxu0 %v59
    %730 = vmatprep.subr.mxu0 0.0
    %731 = vmatpush1.msra.mxu0 %v58
    %732 = vmatprep.subr.mxu0 0.0
    %733 = vmatpush1.msra.mxu0 %v57
    %734 = vmatprep.subr.mxu0 0.0
    %735 = vmatpush1.msra.mxu0 %v56
    %736 = vmatprep.subr.mxu0 0.0
    %737 = vmatpush2.msra.mxu0 0.0
    %738 = vmatprep.subr.mxu0 0.0
    %739 = vmatpush2.msra.mxu0 0.0
    %740 = vmatprep.subr.mxu0 0.0
    %741 = vmatpush2.msra.mxu0 0.0
    %742 = vmatprep.subr.mxu0 0.0
    %743 = vmatpush2.msra.mxu0 0.0
    %744 = vmatprep.subr.mxu0 0.0
    %745 = vmatpush2.msra.mxu0 0.0
    %746 = vmatprep.subr.mxu0 0.0
    %747 = vmatpush2.msra.mxu0 0.0
    %748 = vmatprep.subr.mxu0 0.0
    %749 = vmatpush2.msra.mxu0 0.0
    %750 = vmatprep.subr.mxu0 0.0
    %751 = vmatpush2.msra.mxu0 0.0
    %752 = vmatprep.subr.mxu0 0.0
    %753 = vmatpush2.msra.mxu0 0.0
    %754 = vmatprep.subr.mxu0 0.0
    %755 = vmatpush2.msra.mxu0 0.0
    %756 = vmatprep.subr.mxu0 0.0
    %757 = vmatpush2.msra.mxu0 0.0
    %758 = vmatprep.subr.mxu0 0.0
    %759 = vmatpush2.msra.mxu0 0.0
    %760 = vmatprep.subr.mxu0 0.0
    %761 = vmatpush2.msra.mxu0 0.0
    %762 = vmatprep.subr.mxu0 0.0
    %763 = vmatpush2.msra.mxu0 0.0
    %764 = vmatprep.subr.mxu0 0.0
    %765 = vmatpush2.msra.mxu0 0.0
    %766 = vmatprep.subr.mxu0 0.0
    %767 = vmatpush2.msra.mxu0 0.0
    %768 = vmatprep.mubr.f32.mxu0 0.0
    %769 = vmatmul.mubr.f32.gmra.mxu0 %v702
    %v770 = vpop.f32.mrf.mxu0
    %v771 = vadd.f32 0.0, %v770
    %v772 = vpop.f32.mrf.mxu0
    %773 = vdwg.mxu0
    %v775 = vrot.slane %v771, 4
    %v776 = vrot.slane %v771, 5
    %v779 = vadd.f32 %v141, %v775
    %v780 = vadd.f32 %v146, %v776
    %v781 = vsub.f32 0.0, %v779
    %v782 = vsub.f32 0.0, %v780
    %v783 = vmul.f32 %v781, 1.442695
    %v784 = vpow.pop %v783
    %v785 = vmul.f32 %v782, 1.442695
    %v786 = vpow.pop %v785
    %v787 = vadd.f32 %v784, 1.0
    %v788 = vadd.f32 %v786, 1.0
    %v789 = vrcp.pop %v787
    %v790 = vmul.f32 1.0, %v789
    %v791 = vrcp.pop %v788
    %v792 = vmul.f32 1.0, %v791
    %v793 = vtanh.pop %v779
    %v794 = vtanh.pop %v780
    %v797 = vrot.slane %v681, 7
    %v798 = vrot.slane %v682, 7
    %v801 = vmul.f32 %v790, %v797
    %v802 = vmul.f32 %v792, %v798
    %805 = vrot.lane.b32.xlu0 %v793, 64
    %v806 = vpop.permute.xlu0 %805
    %807 = vrot.lane.b32.xlu0 %v794, 64
    %v808 = vpop.permute.xlu0 %807
    %v811 = vmul.f32 %v790, %v806
    %v812 = vmul.f32 %v792, %v808
    %815 = vrot.lane.b32.xlu0 %v811, 32
    %v816 = vpop.permute.xlu0 %815
    %817 = vrot.lane.b32.xlu0 %v812, 32
    %v818 = vpop.permute.xlu0 %817
    %v821 = vadd.f32 %v801, %v816
    %v822 = vadd.f32 %v802, %v818
    %v823 = vtanh.pop %v821
    %v824 = vtanh.pop %v822
    %827 = vrot.lane.b32.xlu0 %v823, 64
    %v828 = vpop.permute.xlu0 %827
    %829 = vrot.lane.b32.xlu0 %v824, 64
    %v830 = vpop.permute.xlu0 %829
    %v833 = vmul.f32 %v790, %v828
    %v834 = vmul.f32 %v792, %v830
    %v837 = vrot.slane %v833, 4
    %v838 = vrot.slane %v834, 3
    %v839 = vsel %vm280, %v838, %v837
    %840 = vrot.lane.b32.xlu0 %v839, 32
    %v841 = vpop.permute.xlu0 %840
    %v842 = vsel %vm149, %v841, 0
    %844 = vmatprep.subr.mxu0 0.0
    %845 = vmatpush1.msra.mxu0 0.0
    %846 = vmatprep.subr.mxu0 0.0
    %847 = vmatpush1.msra.mxu0 0.0
    %848 = vmatprep.subr.mxu0 0.0
    %849 = vmatpush1.msra.mxu0 0.0
    %850 = vmatprep.subr.mxu0 0.0
    %851 = vmatpush1.msra.mxu0 0.0
    %852 = vmatprep.subr.mxu0 0.0
    %853 = vmatpush1.msra.mxu0 0.0
    %854 = vmatprep.subr.mxu0 0.0
    %855 = vmatpush1.msra.mxu0 0.0
    %856 = vmatprep.subr.mxu0 0.0
    %857 = vmatpush1.msra.mxu0 0.0
    %858 = vmatprep.subr.mxu0 0.0
    %859 = vmatpush1.msra.mxu0 0.0
    %860 = vmatprep.subr.mxu0 0.0
    %861 = vmatpush1.msra.mxu0 0.0
    %862 = vmatprep.subr.mxu0 0.0
    %863 = vmatpush1.msra.mxu0 0.0
    %864 = vmatprep.subr.mxu0 0.0
    %865 = vmatpush1.msra.mxu0 0.0
    %866 = vmatprep.subr.mxu0 0.0
    %867 = vmatpush1.msra.mxu0 0.0
    %868 = vmatprep.subr.mxu0 0.0
    %869 = vmatpush1.msra.mxu0 %v59
    %870 = vmatprep.subr.mxu0 0.0
    %871 = vmatpush1.msra.mxu0 %v58
    %872 = vmatprep.subr.mxu0 0.0
    %873 = vmatpush1.msra.mxu0 %v57
    %874 = vmatprep.subr.mxu0 0.0
    %875 = vmatpush1.msra.mxu0 %v56
    %876 = vmatprep.subr.mxu0 0.0
    %877 = vmatpush2.msra.mxu0 0.0
    %878 = vmatprep.subr.mxu0 0.0
    %879 = vmatpush2.msra.mxu0 0.0
    %880 = vmatprep.subr.mxu0 0.0
    %881 = vmatpush2.msra.mxu0 0.0
    %882 = vmatprep.subr.mxu0 0.0
    %883 = vmatpush2.msra.mxu0 0.0
    %884 = vmatprep.subr.mxu0 0.0
    %885 = vmatpush2.msra.mxu0 0.0
    %886 = vmatprep.subr.mxu0 0.0
    %887 = vmatpush2.msra.mxu0 0.0
    %888 = vmatprep.subr.mxu0 0.0
    %889 = vmatpush2.msra.mxu0 0.0
    %890 = vmatprep.subr.mxu0 0.0
    %891 = vmatpush2.msra.mxu0 0.0
    %892 = vmatprep.subr.mxu0 0.0
    %893 = vmatpush2.msra.mxu0 0.0
    %894 = vmatprep.subr.mxu0 0.0
    %895 = vmatpush2.msra.mxu0 0.0
    %896 = vmatprep.subr.mxu0 0.0
    %897 = vmatpush2.msra.mxu0 0.0
    %898 = vmatprep.subr.mxu0 0.0
    %899 = vmatpush2.msra.mxu0 0.0
    %900 = vmatprep.subr.mxu0 0.0
    %901 = vmatpush2.msra.mxu0 0.0
    %902 = vmatprep.subr.mxu0 0.0
    %903 = vmatpush2.msra.mxu0 0.0
    %904 = vmatprep.subr.mxu0 0.0
    %905 = vmatpush2.msra.mxu0 0.0
    %906 = vmatprep.subr.mxu0 0.0
    %907 = vmatpush2.msra.mxu0 0.0
    %908 = vmatprep.mubr.f32.mxu0 0.0
    %909 = vmatmul.mubr.f32.gmra.mxu0 %v842
    %v910 = vpop.f32.mrf.mxu0
    %v911 = vadd.f32 0.0, %v910
    %v912 = vpop.f32.mrf.mxu0
    %913 = vdwg.mxu0
    %v915 = vrot.slane %v911, 3
    %v916 = vrot.slane %v911, 4
    %v919 = vadd.f32 %v141, %v915
    %v920 = vadd.f32 %v146, %v916
    %v921 = vsub.f32 0.0, %v919
    %v922 = vsub.f32 0.0, %v920
    %v923 = vmul.f32 %v921, 1.442695
    %v924 = vpow.pop %v923
    %v925 = vmul.f32 %v922, 1.442695
    %v926 = vpow.pop %v925
    %v927 = vadd.f32 %v924, 1.0
    %v928 = vadd.f32 %v926, 1.0
    %v929 = vrcp.pop %v927
    %v930 = vmul.f32 1.0, %v929
    %v931 = vrcp.pop %v928
    %v932 = vmul.f32 1.0, %v931
    %v933 = vtanh.pop %v919
    %v934 = vtanh.pop %v920
    %v937 = vrot.slane %v821, 7
    %v938 = vrot.slane %v822, 7
    %v941 = vmul.f32 %v930, %v937
    %v942 = vmul.f32 %v932, %v938
    %945 = vrot.lane.b32.xlu0 %v933, 64
    %v946 = vpop.permute.xlu0 %945
    %947 = vrot.lane.b32.xlu0 %v934, 64
    %v948 = vpop.permute.xlu0 %947
    %v951 = vmul.f32 %v930, %v946
    %v952 = vmul.f32 %v932, %v948
    %955 = vrot.lane.b32.xlu0 %v951, 32
    %v956 = vpop.permute.xlu0 %955
    %957 = vrot.lane.b32.xlu0 %v952, 32
    %v958 = vpop.permute.xlu0 %957
    %v961 = vadd.f32 %v941, %v956
    %v962 = vadd.f32 %v942, %v958
    %v963 = vtanh.pop %v961
    %v964 = vtanh.pop %v962
    %967 = vrot.lane.b32.xlu0 %v963, 64
    %v968 = vpop.permute.xlu0 %967
    %969 = vrot.lane.b32.xlu0 %v964, 64
    %v970 = vpop.permute.xlu0 %969
    %v973 = vmul.f32 %v930, %v968
    %v974 = vmul.f32 %v932, %v970
    %v977 = vrot.slane %v973, 5
    %v978 = vrot.slane %v974, 4
    %v979 = vsel %vm280, %v978, %v977
    %980 = vrot.lane.b32.xlu0 %v979, 32
    %v981 = vpop.permute.xlu0 %980
    %v982 = vsel %vm149, %v981, 0
    %984 = vmatprep.subr.mxu0 0.0
    %985 = vmatpush1.msra.mxu0 0.0
    %986 = vmatprep.subr.mxu0 0.0
    %987 = vmatpush1.msra.mxu0 0.0
    %988 = vmatprep.subr.mxu0 0.0
    %989 = vmatpush1.msra.mxu0 0.0
    %990 = vmatprep.subr.mxu0 0.0
    %991 = vmatpush1.msra.mxu0 0.0
    %992 = vmatprep.subr.mxu0 0.0
    %993 = vmatpush1.msra.mxu0 0.0
    %994 = vmatprep.subr.mxu0 0.0
    %995 = vmatpush1.msra.mxu0 0.0
    %996 = vmatprep.subr.mxu0 0.0
    %997 = vmatpush1.msra.mxu0 0.0
    %998 = vmatprep.subr.mxu0 0.0
    %999 = vmatpush1.msra.mxu0 0.0
    %1000 = vmatprep.subr.mxu0 0.0
    %1001 = vmatpush1.msra.mxu0 0.0
    %1002 = vmatprep.subr.mxu0 0.0
    %1003 = vmatpush1.msra.mxu0 0.0
    %1004 = vmatprep.subr.mxu0 0.0
    %1005 = vmatpush1.msra.mxu0 0.0
    %1006 = vmatprep.subr.mxu0 0.0
    %1007 = vmatpush1.msra.mxu0 0.0
    %1008 = vmatprep.subr.mxu0 0.0
    %1009 = vmatpush1.msra.mxu0 %v59
    %1010 = vmatprep.subr.mxu0 0.0
    %1011 = vmatpush1.msra.mxu0 %v58
    %1012 = vmatprep.subr.mxu0 0.0
    %1013 = vmatpush1.msra.mxu0 %v57
    %1014 = vmatprep.subr.mxu0 0.0
    %1015 = vmatpush1.msra.mxu0 %v56
    %1016 = vmatprep.subr.mxu0 0.0
    %1017 = vmatpush2.msra.mxu0 0.0
    %1018 = vmatprep.subr.mxu0 0.0
    %1019 = vmatpush2.msra.mxu0 0.0
    %1020 = vmatprep.subr.mxu0 0.0
    %1021 = vmatpush2.msra.mxu0 0.0
    %1022 = vmatprep.subr.mxu0 0.0
    %1023 = vmatpush2.msra.mxu0 0.0
    %1024 = vmatprep.subr.mxu0 0.0
    %1025 = vmatpush2.msra.mxu0 0.0
    %1026 = vmatprep.subr.mxu0 0.0
    %1027 = vmatpush2.msra.mxu0 0.0
    %1028 = vmatprep.subr.mxu0 0.0
    %1029 = vmatpush2.msra.mxu0 0.0
    %1030 = vmatprep.subr.mxu0 0.0
    %1031 = vmatpush2.msra.mxu0 0.0
    %1032 = vmatprep.subr.mxu0 0.0
    %1033 = vmatpush2.msra.mxu0 0.0
    %1034 = vmatprep.subr.mxu0 0.0
    %1035 = vmatpush2.msra.mxu0 0.0
    %1036 = vmatprep.subr.mxu0 0.0
    %1037 = vmatpush2.msra.mxu0 0.0
    %1038 = vmatprep.subr.mxu0 0.0
    %1039 = vmatpush2.msra.mxu0 0.0
    %1040 = vmatprep.subr.mxu0 0.0
    %1041 = vmatpush2.msra.mxu0 0.0
    %1042 = vmatprep.subr.mxu0 0.0
    %1043 = vmatpush2.msra.mxu0 0.0
    %1044 = vmatprep.subr.mxu0 0.0
    %1045 = vmatpush2.msra.mxu0 0.0
    %1046 = vmatprep.subr.mxu0 0.0
    %1047 = vmatpush2.msra.mxu0 0.0
    %1048 = vmatprep.mubr.f32.mxu0 0.0
    %1049 = vmatmul.mubr.f32.gmra.mxu0 %v982
    %v1050 = vpop.f32.mrf.mxu0
    %v1051 = vadd.f32 0.0, %v1050
    %v1052 = vpop.f32.mrf.mxu0
    %1053 = vdwg.mxu0
    %v1055 = vrot.slane %v1051, 2
    %v1056 = vrot.slane %v1051, 3
    %v1059 = vadd.f32 %v141, %v1055
    %v1060 = vadd.f32 %v146, %v1056
    %v1061 = vsub.f32 0.0, %v1059
    %v1062 = vsub.f32 0.0, %v1060
    %v1063 = vmul.f32 %v1061, 1.442695
    %v1064 = vpow.pop %v1063
    %v1065 = vmul.f32 %v1062, 1.442695
    %v1066 = vpow.pop %v1065
    %v1067 = vadd.f32 %v1064, 1.0
    %v1068 = vadd.f32 %v1066, 1.0
    %v1069 = vrcp.pop %v1067
    %v1070 = vmul.f32 1.0, %v1069
    %v1071 = vrcp.pop %v1068
    %v1072 = vmul.f32 1.0, %v1071
    %v1073 = vtanh.pop %v1059
    %v1074 = vtanh.pop %v1060
    %v1077 = vrot.slane %v961, 7
    %v1078 = vrot.slane %v962, 7
    %v1081 = vmul.f32 %v1070, %v1077
    %v1082 = vmul.f32 %v1072, %v1078
    %1085 = vrot.lane.b32.xlu0 %v1073, 64
    %v1086 = vpop.permute.xlu0 %1085
    %1087 = vrot.lane.b32.xlu0 %v1074, 64
    %v1088 = vpop.permute.xlu0 %1087
    %v1091 = vmul.f32 %v1070, %v1086
    %v1092 = vmul.f32 %v1072, %v1088
    %1095 = vrot.lane.b32.xlu0 %v1091, 32
    %v1096 = vpop.permute.xlu0 %1095
    %1097 = vrot.lane.b32.xlu0 %v1092, 32
    %v1098 = vpop.permute.xlu0 %1097
    %v1101 = vadd.f32 %v1081, %v1096
    %v1102 = vadd.f32 %v1082, %v1098
    %v1103 = vtanh.pop %v1101
    %v1104 = vtanh.pop %v1102
    %1107 = vrot.lane.b32.xlu0 %v1103, 64
    %v1108 = vpop.permute.xlu0 %1107
    %1109 = vrot.lane.b32.xlu0 %v1104, 64
    %v1110 = vpop.permute.xlu0 %1109
    %v1113 = vmul.f32 %v1070, %v1108
    %v1114 = vmul.f32 %v1072, %v1110
    %v1117 = vrot.slane %v1113, 6
    %v1118 = vrot.slane %v1114, 5
    %v1119 = vsel %vm280, %v1118, %v1117
    %1120 = vrot.lane.b32.xlu0 %v1119, 32
    %v1121 = vpop.permute.xlu0 %1120
    %v1122 = vsel %vm149, %v1121, 0
    %1124 = vmatprep.subr.mxu0 0.0
    %1125 = vmatpush1.msra.mxu0 0.0
    %1126 = vmatprep.subr.mxu0 0.0
    %1127 = vmatpush1.msra.mxu0 0.0
    %1128 = vmatprep.subr.mxu0 0.0
    %1129 = vmatpush1.msra.mxu0 0.0
    %1130 = vmatprep.subr.mxu0 0.0
    %1131 = vmatpush1.msra.mxu0 0.0
    %1132 = vmatprep.subr.mxu0 0.0
    %1133 = vmatpush1.msra.mxu0 0.0
    %1134 = vmatprep.subr.mxu0 0.0
    %1135 = vmatpush1.msra.mxu0 0.0
    %1136 = vmatprep.subr.mxu0 0.0
    %1137 = vmatpush1.msra.mxu0 0.0
    %1138 = vmatprep.subr.mxu0 0.0
    %1139 = vmatpush1.msra.mxu0 0.0
    %1140 = vmatprep.subr.mxu0 0.0
    %1141 = vmatpush1.msra.mxu0 0.0
    %1142 = vmatprep.subr.mxu0 0.0
    %1143 = vmatpush1.msra.mxu0 0.0
    %1144 = vmatprep.subr.mxu0 0.0
    %1145 = vmatpush1.msra.mxu0 0.0
    %1146 = vmatprep.subr.mxu0 0.0
    %1147 = vmatpush1.msra.mxu0 0.0
    %1148 = vmatprep.subr.mxu0 0.0
    %1149 = vmatpush1.msra.mxu0 %v59
    %1150 = vmatprep.subr.mxu0 0.0
    %1151 = vmatpush1.msra.mxu0 %v58
    %1152 = vmatprep.subr.mxu0 0.0
    %1153 = vmatpush1.msra.mxu0 %v57
    %1154 = vmatprep.subr.mxu0 0.0
    %1155 = vmatpush1.msra.mxu0 %v56
    %1156 = vmatprep.subr.mxu0 0.0
    %1157 = vmatpush2.msra.mxu0 0.0
    %1158 = vmatprep.subr.mxu0 0.0
    %1159 = vmatpush2.msra.mxu0 0.0
    %1160 = vmatprep.subr.mxu0 0.0
    %1161 = vmatpush2.msra.mxu0 0.0
    %1162 = vmatprep.subr.mxu0 0.0
    %1163 = vmatpush2.msra.mxu0 0.0
    %1164 = vmatprep.subr.mxu0 0.0
    %1165 = vmatpush2.msra.mxu0 0.0
    %1166 = vmatprep.subr.mxu0 0.0
    %1167 = vmatpush2.msra.mxu0 0.0
    %1168 = vmatprep.subr.mxu0 0.0
    %1169 = vmatpush2.msra.mxu0 0.0
    %1170 = vmatprep.subr.mxu0 0.0
    %1171 = vmatpush2.msra.mxu0 0.0
    %1172 = vmatprep.subr.mxu0 0.0
    %1173 = vmatpush2.msra.mxu0 0.0
    %1174 = vmatprep.subr.mxu0 0.0
    %1175 = vmatpush2.msra.mxu0 0.0
    %1176 = vmatprep.subr.mxu0 0.0
    %1177 = vmatpush2.msra.mxu0 0.0
    %1178 = vmatprep.subr.mxu0 0.0
    %1179 = vmatpush2.msra.mxu0 0.0
    %1180 = vmatprep.subr.mxu0 0.0
    %1181 = vmatpush2.msra.mxu0 0.0
    %1182 = vmatprep.subr.mxu0 0.0
    %1183 = vmatpush2.msra.mxu0 0.0
    %1184 = vmatprep.subr.mxu0 0.0
    %1185 = vmatpush2.msra.mxu0 0.0
    %1186 = vmatprep.subr.mxu0 0.0
    %1187 = vmatpush2.msra.mxu0 0.0
    %1188 = vmatprep.mubr.f32.mxu0 0.0
    %1189 = vmatmul.mubr.f32.gmra.mxu0 %v1122
    %v1190 = vpop.f32.mrf.mxu0
    %v1191 = vadd.f32 0.0, %v1190
    %v1192 = vpop.f32.mrf.mxu0
    %1193 = vdwg.mxu0
    %v1195 = vrot.slane %v1191, 1
    %v1196 = vrot.slane %v1191, 2
    %v1199 = vadd.f32 %v141, %v1195
    %v1200 = vadd.f32 %v146, %v1196
    %v1201 = vsub.f32 0.0, %v1199
    %v1202 = vsub.f32 0.0, %v1200
    %v1203 = vmul.f32 %v1201, 1.442695
    %v1204 = vpow.pop %v1203
    %v1205 = vmul.f32 %v1202, 1.442695
    %v1206 = vpow.pop %v1205
    %v1207 = vadd.f32 %v1204, 1.0
    %v1208 = vadd.f32 %v1206, 1.0
    %v1209 = vrcp.pop %v1207
    %v1210 = vmul.f32 1.0, %v1209
    %v1211 = vrcp.pop %v1208
    %v1212 = vmul.f32 1.0, %v1211
    %v1213 = vtanh.pop %v1199
    %v1214 = vtanh.pop %v1200
    %v1217 = vrot.slane %v1101, 7
    %v1218 = vrot.slane %v1102, 7
    %v1221 = vmul.f32 %v1210, %v1217
    %v1222 = vmul.f32 %v1212, %v1218
    %1225 = vrot.lane.b32.xlu0 %v1213, 64
    %v1226 = vpop.permute.xlu0 %1225
    %1227 = vrot.lane.b32.xlu0 %v1214, 64
    %v1228 = vpop.permute.xlu0 %1227
    %v1231 = vmul.f32 %v1210, %v1226
    %v1232 = vmul.f32 %v1212, %v1228
    %1235 = vrot.lane.b32.xlu0 %v1231, 32
    %v1236 = vpop.permute.xlu0 %1235
    %1237 = vrot.lane.b32.xlu0 %v1232, 32
    %v1238 = vpop.permute.xlu0 %1237
    %v1241 = vadd.f32 %v1221, %v1236
    %v1242 = vadd.f32 %v1222, %v1238
    %v1243 = vtanh.pop %v1241
    %v1244 = vtanh.pop %v1242
    %1247 = vrot.lane.b32.xlu0 %v1243, 64
    %v1248 = vpop.permute.xlu0 %1247
    %1249 = vrot.lane.b32.xlu0 %v1244, 64
    %v1250 = vpop.permute.xlu0 %1249
    %v1253 = vmul.f32 %v1210, %v1248
    %v1254 = vmul.f32 %v1212, %v1250
    %v1255 = vld [vmem:[%s4] sm:$0xff]
    %v1256 = vld [vmem:[%s4 + $0x8] sm:$0xff]
    %v1257 = vld [vmem:[%s4 + $0x10] sm:$0xff]
    %v1258 = vld [vmem:[%s4 + $0x18] sm:$0xff]
    %v1259 = vld [vmem:[%s5] sm:$0x1]
    %v1261 = vlaneseq
    %v1262 = vshrl.u32 %v1261, 7
    %v1263 = vsub.s32 0, %v1262
    %v1264 = vrot.slane %v1259, %v1263
    %v1268 = vrot.slane %v1253, 7
    %v1269 = vrot.slane %v1254, 6
    %v1270 = vsel %vm280, %v1269, %v1268
    %1271 = vrot.lane.b32.xlu0 %v1270, 32
    %v1272 = vpop.permute.xlu0 %1271
    %v1273 = vsel %vm149, %v1272, 0
    %1275 = vmatprep.subr.mxu0 0.0
    %1276 = vmatpush1.msra.mxu0 0.0
    %1277 = vmatprep.subr.mxu0 0.0
    %1278 = vmatpush1.msra.mxu0 0.0
    %1279 = vmatprep.subr.mxu0 0.0
    %1280 = vmatpush1.msra.mxu0 0.0
    %1281 = vmatprep.subr.mxu0 0.0
    %1282 = vmatpush1.msra.mxu0 0.0
    %1283 = vmatprep.subr.mxu0 0.0
    %1284 = vmatpush1.msra.mxu0 0.0
    %1285 = vmatprep.subr.mxu0 0.0
    %1286 = vmatpush1.msra.mxu0 0.0
    %1287 = vmatprep.subr.mxu0 0.0
    %1288 = vmatpush1.msra.mxu0 0.0
    %1289 = vmatprep.subr.mxu0 0.0
    %1290 = vmatpush1.msra.mxu0 0.0
    %1291 = vmatprep.subr.mxu0 0.0
    %1292 = vmatpush1.msra.mxu0 0.0
    %1293 = vmatprep.subr.mxu0 0.0
    %1294 = vmatpush1.msra.mxu0 0.0
    %1295 = vmatprep.subr.mxu0 0.0
    %1296 = vmatpush1.msra.mxu0 0.0
    %1297 = vmatprep.subr.mxu0 0.0
    %1298 = vmatpush1.msra.mxu0 0.0
    %1299 = vmatprep.subr.mxu0 0.0
    %1300 = vmatpush1.msra.mxu0 %v1258
    %1301 = vmatprep.subr.mxu0 0.0
    %1302 = vmatpush1.msra.mxu0 %v1257
    %1303 = vmatprep.subr.mxu0 0.0
    %1304 = vmatpush1.msra.mxu0 %v1256
    %1305 = vmatprep.subr.mxu0 0.0
    %1306 = vmatpush1.msra.mxu0 %v1255
    %1307 = vmatprep.subr.mxu0 0.0
    %1308 = vmatpush2.msra.mxu0 0.0
    %1309 = vmatprep.subr.mxu0 0.0
    %1310 = vmatpush2.msra.mxu0 0.0
    %1311 = vmatprep.subr.mxu0 0.0
    %1312 = vmatpush2.msra.mxu0 0.0
    %1313 = vmatprep.subr.mxu0 0.0
    %1314 = vmatpush2.msra.mxu0 0.0
    %1315 = vmatprep.subr.mxu0 0.0
    %1316 = vmatpush2.msra.mxu0 0.0
    %1317 = vmatprep.subr.mxu0 0.0
    %1318 = vmatpush2.msra.mxu0 0.0
    %1319 = vmatprep.subr.mxu0 0.0
    %1320 = vmatpush2.msra.mxu0 0.0
    %1321 = vmatprep.subr.mxu0 0.0
    %1322 = vmatpush2.msra.mxu0 0.0
    %1323 = vmatprep.subr.mxu0 0.0
    %1324 = vmatpush2.msra.mxu0 0.0
    %1325 = vmatprep.subr.mxu0 0.0
    %1326 = vmatpush2.msra.mxu0 0.0
    %1327 = vmatprep.subr.mxu0 0.0
    %1328 = vmatpush2.msra.mxu0 0.0
    %1329 = vmatprep.subr.mxu0 0.0
    %1330 = vmatpush2.msra.mxu0 0.0
    %1331 = vmatprep.subr.mxu0 0.0
    %1332 = vmatpush2.msra.mxu0 0.0
    %1333 = vmatprep.subr.mxu0 0.0
    %1334 = vmatpush2.msra.mxu0 0.0
    %1335 = vmatprep.subr.mxu0 0.0
    %1336 = vmatpush2.msra.mxu0 0.0
    %1337 = vmatprep.subr.mxu0 0.0
    %1338 = vmatpush2.msra.mxu0 0.0
    %1339 = vmatprep.mubr.f32.mxu0 0.0
    %1340 = vmatmul.mubr.f32.gmra.mxu0 %v1273
    %v1341 = vpop.f32.mrf.mxu0
    %v1342 = vadd.f32 %v1264, %v1341
    %v1343 = vpop.f32.mrf.mxu0
    %1344 = vdwg.mxu0
    %vm1345 = vcmask 25600
    %1346 = vst.msk [vmem:[#allocation7] sm:$0x3] %vm1345, %v1342
    // Predicated region
    $region34: #{tpu_custom_call.1} parent=1 // pred_check
      _
    $region35: #{tpu_custom_call.1} parent=1 // pred_check_branch
      %1348 = sbr.rel (0) target = $region37
    $region36: #{tpu_custom_call.1} parent=1 // pred_region
      %s1350 = ssub.s32 32, 32
      %1351 = vsyncadd [#allocation4], %s1350
      %s1353 = sshll.u32 [#allocation7], 4
      %s1354 = int_to_ptr.vmem [resolvable:$true] %s1353
      %1356 = dma.vmem_to_hbm [thread:$0]  %s1354, 32, %s6, [#allocation4]
    $region37: #{tpu_custom_call.1} parent=1 // pred_fallthru
      _
    // Predicated region
    $region38: #{tpu_custom_call.1} parent=1 // pred_check
      _
    $region39: #{tpu_custom_call.1} parent=1 // pred_check_branch
      %1358 = sbr.rel (0) target = $region41
    $region40: #{tpu_custom_call.1} parent=1 // pred_region
      %1359 = dma.done [#allocation4], 32
    $region41: #{tpu_custom_call.1} parent=1 // pred_fallthru
      _
    %1360 = vsyncpa [#allocation3], 1
    %1361 = vsyncpa [#allocation6], 1
    %1362 = vsyncpa [#allocation4], 1

</llo_original>
